<compile_context>
chip_gen: v7x
topology: tpu7x:2x2x1
jax: 0.10.0
libtpu: 0.0.40
codegen_flags: <defaults>
</compile_context>

<pallas_src>
import functools

import jax
import jax.numpy as jnp
from jax.experimental import pallas as pl
from jax.experimental.pallas import tpu as pltpu


def _fused_gcn_kernel(adj_ref, x_ref, w1_ref, w2_ref, b_ref,   # inputs
                      h1_ref, h2_ref,                           # outputs
                      acc_ref, sup_ref, h1s_ref):               # scratch
    """Fused 2-layer GCN.

    grid = (phase, i, k):
      phase 0: h1[i-tile] = sum_k adj[i,k] @ support1[k] + b1
      phase 1: h2[i-tile] = sum_k adj[i,k] @ support2[k] + b2
    support1 = nan_to_zero(x) @ W1  (computed once, resident bf16 slab)
    support2 = relu(h1) @ W2        (computed once per row tile at phase-0 finalize)
    """
    p = pl.program_id(0)            # layer phase: 0 or 1
    i = pl.program_id(1)            # adj row tile
    k = pl.program_id(2)            # adj col tile (reduction)
    nk = pl.num_programs(2)

    tm, tk = adj_ref.shape          # (row tile, col tile) — equal by construction
    n_rows = h1s_ref.shape[0]       # padded node count

    # ---- one-time prologue: support1 = nan_to_zero(x) @ W1 (first grid step only) ----
    @pl.when((p == 0) & (i == 0) & (k == 0))
    def _():
        x = x_ref[...]
        x = jnp.where(jnp.isnan(x), jnp.zeros_like(x), x)
        s1 = jnp.dot(x, w1_ref[...], preferred_element_type=jnp.float32)
        sup_ref[0:n_rows, :] = s1.astype(sup_ref.dtype)

    # ---- init the f32 accumulator at the start of each reduction ----
    @pl.when(k == 0)
    def _():
        acc_ref[...] = jnp.zeros_like(acc_ref)

    # ---- accumulate: acc += adj[i, k] @ support[layer p][k]  (bf16 MXU, f32 acc) ----
    row0 = pl.multiple_of(p * n_rows + k * tk, tk)
    sup_tile = sup_ref[pl.ds(row0, tk), :]
    acc_ref[...] += jnp.dot(adj_ref[...], sup_tile,
                            preferred_element_type=jnp.float32)

    # ---- finalize layer 1 at the last reduction step ----
    @pl.when((k == nk - 1) & (p == 0))
    def _():
        h1 = acc_ref[...] + b_ref[0:1, :]
        h1_ref[...] = h1.astype(h1_ref.dtype)
        r0 = pl.multiple_of(i * tm, tm)
        h1s_ref[pl.ds(r0, tm), :] = h1
        # support2 rows for this tile: relu(h1) @ W2 (stored bf16 for the phase-1 stream)
        s2 = jnp.dot(jnp.maximum(h1, 0.0), w2_ref[...],
                     preferred_element_type=jnp.float32)
        sup_ref[pl.ds(n_rows + r0, tm), :] = s2.astype(sup_ref.dtype)
        # Placeholder so the h2 output block is always defined before any copy-out;
        # overwritten with the real values in phase 1.
        h2_ref[...] = jnp.zeros_like(h2_ref)

    # ---- finalize layer 2 at the last reduction step ----
    @pl.when((k == nk - 1) & (p == 1))
    def _():
        h2_ref[...] = (acc_ref[...] + b_ref[1:2, :]).astype(h2_ref.dtype)
        r0 = pl.multiple_of(i * tm, tm)
        # Re-emit the (unchanged) h1 tile so this phase's copy-outs carry valid data.
        h1_ref[...] = h1s_ref[pl.ds(r0, tm), :].astype(h1_ref.dtype)


def _pad2d(a, rows, cols):
    r, c = a.shape
    return jnp.pad(a, ((0, rows - r), (0, cols - c)))


def gcn_forward(adj, x, params, *, block=128):
    """Mirrors GCN.forward(adj, x) in inference mode."""
    n, f = x.shape
    nhid = params["w1"].shape[1]
    ncls = params["w2"].shape[1]

    bt = block
    n_pad = -(-n // bt) * bt                       # nodes -> multiple of tile
    f_pad = -(-f // 128) * 128                     # input features -> lane multiple
    h_pad = -(-max(nhid, ncls) // 128) * 128       # hidden/class width -> lane multiple

    # Pad everything with zeros (zero rows/cols are exact no-ops for the math),
    # stream adj as bf16, keep features/weights/accumulation in f32.
    adj_p = _pad2d(adj.astype(jnp.float32), n_pad, n_pad).astype(jnp.bfloat16)
    x_p = _pad2d(x.astype(jnp.float32), n_pad, f_pad)
    w1_p = _pad2d(params["w1"].astype(jnp.float32), f_pad, h_pad)
    w2_p = _pad2d(params["w2"].astype(jnp.float32), h_pad, h_pad)
    b_p = jnp.stack([
        jnp.pad(params["b1"].astype(jnp.float32), (0, h_pad - nhid)),
        jnp.pad(params["b2"].astype(jnp.float32), (0, h_pad - ncls)),
    ])

    ni = n_pad // bt
    nk = n_pad // bt
    grid = (2, ni, nk)   # (layer phase, adj row tiles, adj col tiles [reduction])

    h1_p, h2_p = pl.pallas_call(
        _fused_gcn_kernel,
        out_shape=(jax.ShapeDtypeStruct((n_pad, h_pad), jnp.float32),
                   jax.ShapeDtypeStruct((n_pad, h_pad), jnp.float32)),
        grid_spec=pltpu.PrefetchScalarGridSpec(
            num_scalar_prefetch=0,
            grid=grid,
            in_specs=[
                pl.BlockSpec((bt, bt), lambda p, i, k: (i, k)),        # adj: streamed
                pl.BlockSpec((n_pad, f_pad), lambda p, i, k: (0, 0)),  # x: resident
                pl.BlockSpec((f_pad, h_pad), lambda p, i, k: (0, 0)),  # W1: resident
                pl.BlockSpec((h_pad, h_pad), lambda p, i, k: (0, 0)),  # W2: resident
                pl.BlockSpec((2, h_pad), lambda p, i, k: (0, 0)),      # [b1; b2]: resident
            ],
            out_specs=[
                pl.BlockSpec((bt, h_pad), lambda p, i, k: (i, 0)),     # h1
                pl.BlockSpec((bt, h_pad), lambda p, i, k: (i, 0)),     # h2
            ],
            scratch_shapes=[
                pltpu.VMEM((bt, h_pad), jnp.float32),           # f32 reduction accumulator
                pltpu.VMEM((2 * n_pad, h_pad), jnp.bfloat16),   # support1 / support2 slabs
                pltpu.VMEM((n_pad, h_pad), jnp.float32),        # h1 slab (pre-activation)
            ],
        ),
        compiler_params=pltpu.CompilerParams(
            dimension_semantics=("arbitrary", "arbitrary", "arbitrary"),
            vmem_limit_bytes=64 * 1024 * 1024,
        ),
    )(adj_p, x_p, w1_p, w2_p, b_p)

    h1 = h1_p[:n, :nhid]
    h2 = h2_p[:n, :ncls]
    return h2, [h1, h2]


def _reference_forward(adj, x, params, *, quantize):
    """Pure-JAX reference. quantize=True mirrors the kernel's bf16 adj/support storage."""
    hi = jax.lax.Precision.HIGHEST
    xc = jnp.where(jnp.isnan(x), jnp.zeros_like(x), x)
    adj_q = adj.astype(jnp.bfloat16).astype(jnp.float32) if quantize else adj
    s1 = jnp.dot(xc, params["w1"], precision=hi)
    if quantize:
        s1 = s1.astype(jnp.bfloat16).astype(jnp.float32)
    h1 = jnp.dot(adj_q, s1, precision=hi) + params["b1"]
    s2 = jnp.dot(jnp.maximum(h1, 0.0), params["w2"], precision=hi)
    if quantize:
        s2 = s2.astype(jnp.bfloat16).astype(jnp.float32)
    h2 = jnp.dot(adj_q, s2, precision=hi) + params["b2"]
    return h2, [h1, h2]


if __name__ == "__main__":
    key = jax.random.PRNGKey(0)
    N, NFEAT, NHID, NCLASS = 256, 32, 16, 8   # small graph; exercises a (2, 2, 2) grid

    k_adj, k_x, k_w1, k_b1, k_w2, k_b2 = jax.random.split(key, 6)

    # Symmetric row-normalized adjacency.
    a = jax.random.uniform(k_adj, (N, N), jnp.float32)
    adj = (a + a.T) * 0.5
    adj = adj / jnp.sum(adj, axis=1, keepdims=True)

    # Features with a few NaNs to exercise the isnan/where path.
    x = jax.random.normal(k_x, (N, NFEAT), jnp.float32)
    x = x.at[0, 0].set(jnp.nan).at[3, 5].set(jnp.nan)

    params = {
        "w1": jax.random.normal(k_w1, (NFEAT, NHID), jnp.float32) * 0.1,
        "b1": jax.random.normal(k_b1, (NHID,), jnp.float32) * 0.01,
        "w2": jax.random.normal(k_w2, (NHID, NCLASS), jnp.float32) * 0.1,
        "b2": jax.random.normal(k_b2, (NCLASS,), jnp.float32) * 0.01,
    }
    # (feat2stu / stru2stu Linear layers and sim/semi_loss are unused by forward(); omitted.)

    out, mids = gcn_forward(adj, x, params)
    jax.block_until_ready(out)
    jax.block_until_ready(mids)

    assert out.shape == (N, NCLASS)
    assert mids[0].shape == (N, NHID) and mids[1].shape == (N, NCLASS)

    # Strict check against a reference that mirrors the kernel's bf16 adj/support storage.
    ref_out, ref_mids = _reference_forward(adj, x, params, quantize=True)
    assert jnp.allclose(out, ref_out, atol=5e-3, rtol=5e-3), \
        float(jnp.max(jnp.abs(out - ref_out)))
    assert jnp.allclose(mids[0], ref_mids[0], atol=5e-3, rtol=5e-3)
    assert jnp.allclose(mids[1], ref_mids[1], atol=5e-3, rtol=5e-3)

    # Loose sanity check against the pure-f32 reference (bf16 adj stream => ~1e-3 abs error).
    f32_out, f32_mids = _reference_forward(adj, x, params, quantize=False)
    assert jnp.allclose(out, f32_out, atol=5e-2, rtol=5e-2)
    assert jnp.allclose(mids[0], f32_mids[0], atol=5e-2, rtol=5e-2)

    print("KERNEL_OK")
</pallas_src>

<mosaic_0001>
module attributes {stable_mosaic.version = 11 : i64} {
  func.func @_fused_gcn_kernel(%arg0: i32, %arg1: i32, %arg2: i32, %arg3: memref<128x128xbf16, #tpu.memory_space<vmem>>, %arg4: memref<256x128xf32, #tpu.memory_space<vmem>>, %arg5: memref<128x128xf32, #tpu.memory_space<vmem>>, %arg6: memref<128x128xf32, #tpu.memory_space<vmem>>, %arg7: memref<2x128xf32, #tpu.memory_space<vmem>>, %arg8: memref<128x128xf32, #tpu.memory_space<vmem>>, %arg9: memref<128x128xf32, #tpu.memory_space<vmem>>, %arg10: memref<128x128xf32, #tpu.memory_space<vmem>>, %arg11: memref<512x128xbf16, #tpu.memory_space<vmem>>, %arg12: memref<256x128xf32, #tpu.memory_space<vmem>>) attributes {dimension_semantics = [#tpu.dimension_semantics<arbitrary>, #tpu.dimension_semantics<arbitrary>, #tpu.dimension_semantics<arbitrary>], iteration_bounds = array<i64: 2, 2, 2>, scalar_prefetch = 0 : i64, scratch_operands = 3 : i64, tpu.core_type = #tpu.core_type<tc>, window_params = [{transform_indices = @transform_0, window_bounds = array<i64: 128, 128>}, {pipeline_mode = #tpu.pipeline_mode<synchronous>, transform_indices = @transform_1, window_bounds = array<i64: 256, 128>}, {pipeline_mode = #tpu.pipeline_mode<synchronous>, transform_indices = @transform_2, window_bounds = array<i64: 128, 128>}, {pipeline_mode = #tpu.pipeline_mode<synchronous>, transform_indices = @transform_3, window_bounds = array<i64: 128, 128>}, {pipeline_mode = #tpu.pipeline_mode<synchronous>, transform_indices = @transform_4, window_bounds = array<i64: 2, 128>}, {transform_indices = @transform_5, window_bounds = array<i64: 128, 128>}, {transform_indices = @transform_6, window_bounds = array<i64: 128, 128>}]} {
    %c0_i32 = arith.constant 0 : i32
    %0 = arith.cmpi eq, %arg0, %c0_i32 : i32
    %c0_i32_0 = arith.constant 0 : i32
    %1 = arith.cmpi eq, %arg1, %c0_i32_0 : i32
    %2 = arith.andi %0, %1 : i1
    %c0_i32_1 = arith.constant 0 : i32
    %3 = arith.cmpi eq, %arg2, %c0_i32_1 : i32
    %4 = arith.andi %2, %3 : i1
    %5 = arith.extui %4 : i1 to i32
    %c0_i32_2 = arith.constant 0 : i32
    %6 = arith.cmpi ne, %5, %c0_i32_2 : i32
    scf.if %6 {
      %c0_16 = arith.constant 0 : index
      %c0_17 = arith.constant 0 : index
      %31 = vector.load %arg4[%c0_16, %c0_17] : memref<256x128xf32, #tpu.memory_space<vmem>>, vector<256x128xf32>
      %32 = arith.cmpf one, %31, %31 : vector<256x128xf32>
      %cst_18 = arith.constant 0.000000e+00 : f32
      %33 = vector.broadcast %cst_18 : f32 to vector<256x128xf32>
      %34 = arith.select %32, %33, %31 : vector<256x128xi1>, vector<256x128xf32>
      %c0_19 = arith.constant 0 : index
      %c0_20 = arith.constant 0 : index
      %35 = vector.load %arg5[%c0_19, %c0_20] : memref<128x128xf32, #tpu.memory_space<vmem>>, vector<128x128xf32>
      %cst_21 = arith.constant dense<0.000000e+00> : vector<256x128xf32>
      %36 = tpu.matmul %34, %35, %cst_21 {dimension_numbers = #tpu.dot_dimension_numbers<[1], [0], [0], [1], [0, 0, 1, 1], [], []>} : vector<256x128xf32>, vector<128x128xf32>, vector<256x128xf32> -> vector<256x128xf32>
      %37 = arith.truncf %36 : vector<256x128xf32> to vector<256x128xbf16>
      %c0_22 = arith.constant 0 : index
      %c0_23 = arith.constant 0 : index
      %38 = vector.load %arg11[%c0_22, %c0_23] : memref<512x128xbf16, #tpu.memory_space<vmem>>, vector<256x128xbf16>
      tpu.vector_store %arg11[%c0_22, %c0_23], %37 {strides = array<i32>} : memref<512x128xbf16, #tpu.memory_space<vmem>>, vector<256x128xbf16>,
    } else {
    }
    %c0_i32_3 = arith.constant 0 : i32
    %7 = arith.cmpi eq, %arg2, %c0_i32_3 : i32
    %8 = arith.extui %7 : i1 to i32
    %c0_i32_4 = arith.constant 0 : i32
    %9 = arith.cmpi ne, %8, %c0_i32_4 : i32
    scf.if %9 {
      %cst_16 = arith.constant 0.000000e+00 : f32
      %31 = vector.broadcast %cst_16 : f32 to vector<128x128xf32>
      %c0_17 = arith.constant 0 : index
      %c0_18 = arith.constant 0 : index
      %32 = vector.load %arg10[%c0_17, %c0_18] : memref<128x128xf32, #tpu.memory_space<vmem>>, vector<128x128xf32>
      tpu.vector_store %arg10[%c0_17, %c0_18], %31 {strides = array<i32>} : memref<128x128xf32, #tpu.memory_space<vmem>>, vector<128x128xf32>,
    } else {
    }
    %c256_i32 = arith.constant 256 : i32
    %10 = arith.muli %arg0, %c256_i32 : i32
    %c128_i32 = arith.constant 128 : i32
    %11 = arith.muli %arg2, %c128_i32 : i32
    %12 = arith.addi %10, %11 : i32
    %13 = tpu.assume_multiple %12, 128 : i32
    %14 = arith.index_cast %13 : i32 to index
    %c0 = arith.constant 0 : index
    %15 = vector.load %arg11[%14, %c0] : memref<512x128xbf16, #tpu.memory_space<vmem>>, vector<128x128xbf16>
    %c0_5 = arith.constant 0 : index
    %c0_6 = arith.constant 0 : index
    %16 = vector.load %arg10[%c0_5, %c0_6] : memref<128x128xf32, #tpu.memory_space<vmem>>, vector<128x128xf32>
    %c0_7 = arith.constant 0 : index
    %c0_8 = arith.constant 0 : index
    %17 = vector.load %arg3[%c0_7, %c0_8] : memref<128x128xbf16, #tpu.memory_space<vmem>>, vector<128x128xbf16>
    %cst = arith.constant dense<0.000000e+00> : vector<128x128xf32>
    %18 = tpu.matmul %17, %15, %cst {dimension_numbers = #tpu.dot_dimension_numbers<[1], [0], [0], [1], [0, 0, 1, 1], [], []>} : vector<128x128xbf16>, vector<128x128xbf16>, vector<128x128xf32> -> vector<128x128xf32>
    %19 = arith.addf %16, %18 : vector<128x128xf32>
    %c0_9 = arith.constant 0 : index
    %c0_10 = arith.constant 0 : index
    %20 = vector.load %arg10[%c0_9, %c0_10] : memref<128x128xf32, #tpu.memory_space<vmem>>, vector<128x128xf32>
    tpu.vector_store %arg10[%c0_9, %c0_10], %19 {strides = array<i32>} : memref<128x128xf32, #tpu.memory_space<vmem>>, vector<128x128xf32>,
    %c1_i32 = arith.constant 1 : i32
    %21 = arith.cmpi eq, %arg2, %c1_i32 : i32
    %c0_i32_11 = arith.constant 0 : i32
    %22 = arith.cmpi eq, %arg0, %c0_i32_11 : i32
    %23 = arith.andi %21, %22 : i1
    %24 = arith.extui %23 : i1 to i32
    %c0_i32_12 = arith.constant 0 : i32
    %25 = arith.cmpi ne, %24, %c0_i32_12 : i32
    scf.if %25 {
      %c0_16 = arith.constant 0 : index
      %c0_17 = arith.constant 0 : index
      %31 = vector.load %arg10[%c0_16, %c0_17] : memref<128x128xf32, #tpu.memory_space<vmem>>, vector<128x128xf32>
      %c0_18 = arith.constant 0 : index
      %c0_19 = arith.constant 0 : index
      %32 = vector.load %arg7[%c0_18, %c0_19] : memref<2x128xf32, #tpu.memory_space<vmem>>, vector<1x128xf32>
      %33 = vector.broadcast %32 : vector<1x128xf32> to vector<128x128xf32>
      %34 = arith.addf %31, %33 : vector<128x128xf32>
      %c0_20 = arith.constant 0 : index
      %c0_21 = arith.constant 0 : index
      %35 = vector.load %arg8[%c0_20, %c0_21] : memref<128x128xf32, #tpu.memory_space<vmem>>, vector<128x128xf32>
      tpu.vector_store %arg8[%c0_20, %c0_21], %34 {strides = array<i32>} : memref<128x128xf32, #tpu.memory_space<vmem>>, vector<128x128xf32>,
      %c128_i32_22 = arith.constant 128 : i32
      %36 = arith.muli %arg1, %c128_i32_22 : i32
      %37 = tpu.assume_multiple %36, 128 : i32
      %38 = arith.index_cast %37 : i32 to index
      %c0_23 = arith.constant 0 : index
      %39 = vector.load %arg12[%38, %c0_23] : memref<256x128xf32, #tpu.memory_space<vmem>>, vector<128x128xf32>
      tpu.vector_store %arg12[%38, %c0_23], %34 {strides = array<i32>} : memref<256x128xf32, #tpu.memory_space<vmem>>, vector<128x128xf32>,
      %cst_24 = arith.constant 0.000000e+00 : f32
      %40 = vector.broadcast %cst_24 : f32 to vector<128x128xf32>
      %41 = arith.maximumf %34, %40 : vector<128x128xf32>
      %c0_25 = arith.constant 0 : index
      %c0_26 = arith.constant 0 : index
      %42 = vector.load %arg6[%c0_25, %c0_26] : memref<128x128xf32, #tpu.memory_space<vmem>>, vector<128x128xf32>
      %cst_27 = arith.constant dense<0.000000e+00> : vector<128x128xf32>
      %43 = tpu.matmul %41, %42, %cst_27 {dimension_numbers = #tpu.dot_dimension_numbers<[1], [0], [0], [1], [0, 0, 1, 1], [], []>} : vector<128x128xf32>, vector<128x128xf32>, vector<128x128xf32> -> vector<128x128xf32>
      %44 = arith.truncf %43 : vector<128x128xf32> to vector<128x128xbf16>
      %c256_i32_28 = arith.constant 256 : i32
      %45 = arith.addi %c256_i32_28, %37 : i32
      %46 = arith.index_cast %45 : i32 to index
      %c0_29 = arith.constant 0 : index
      %47 = vector.load %arg11[%46, %c0_29] : memref<512x128xbf16, #tpu.memory_space<vmem>>, vector<128x128xbf16>
      tpu.vector_store %arg11[%46, %c0_29], %44 {strides = array<i32>} : memref<512x128xbf16, #tpu.memory_space<vmem>>, vector<128x128xbf16>,
      %cst_30 = arith.constant 0.000000e+00 : f32
      %48 = vector.broadcast %cst_30 : f32 to vector<128x128xf32>
      %c0_31 = arith.constant 0 : index
      %c0_32 = arith.constant 0 : index
      %49 = vector.load %arg9[%c0_31, %c0_32] : memref<128x128xf32, #tpu.memory_space<vmem>>, vector<128x128xf32>
      tpu.vector_store %arg9[%c0_31, %c0_32], %48 {strides = array<i32>} : memref<128x128xf32, #tpu.memory_space<vmem>>, vector<128x128xf32>,
    } else {
    }
    %c1_i32_13 = arith.constant 1 : i32
    %26 = arith.cmpi eq, %arg2, %c1_i32_13 : i32
    %c1_i32_14 = arith.constant 1 : i32
    %27 = arith.cmpi eq, %arg0, %c1_i32_14 : i32
    %28 = arith.andi %26, %27 : i1
    %29 = arith.extui %28 : i1 to i32
    %c0_i32_15 = arith.constant 0 : i32
    %30 = arith.cmpi ne, %29, %c0_i32_15 : i32
    scf.if %30 {
      %c0_16 = arith.constant 0 : index
      %c0_17 = arith.constant 0 : index
      %31 = vector.load %arg10[%c0_16, %c0_17] : memref<128x128xf32, #tpu.memory_space<vmem>>, vector<128x128xf32>
      %c1 = arith.constant 1 : index
      %c0_18 = arith.constant 0 : index
      %32 = vector.load %arg7[%c1, %c0_18] : memref<2x128xf32, #tpu.memory_space<vmem>>, vector<1x128xf32>
      %33 = vector.broadcast %32 : vector<1x128xf32> to vector<128x128xf32>
      %34 = arith.addf %31, %33 : vector<128x128xf32>
      %c0_19 = arith.constant 0 : index
      %c0_20 = arith.constant 0 : index
      %35 = vector.load %arg9[%c0_19, %c0_20] : memref<128x128xf32, #tpu.memory_space<vmem>>, vector<128x128xf32>
      tpu.vector_store %arg9[%c0_19, %c0_20], %34 {strides = array<i32>} : memref<128x128xf32, #tpu.memory_space<vmem>>, vector<128x128xf32>,
      %c128_i32_21 = arith.constant 128 : i32
      %36 = arith.muli %arg1, %c128_i32_21 : i32
      %37 = tpu.assume_multiple %36, 128 : i32
      %38 = arith.index_cast %37 : i32 to index
      %c0_22 = arith.constant 0 : index
      %39 = vector.load %arg12[%38, %c0_22] : memref<256x128xf32, #tpu.memory_space<vmem>>, vector<128x128xf32>
      %c0_23 = arith.constant 0 : index
      %c0_24 = arith.constant 0 : index
      %40 = vector.load %arg8[%c0_23, %c0_24] : memref<128x128xf32, #tpu.memory_space<vmem>>, vector<128x128xf32>
      tpu.vector_store %arg8[%c0_23, %c0_24], %39 {strides = array<i32>} : memref<128x128xf32, #tpu.memory_space<vmem>>, vector<128x128xf32>,
    } else {
    }
    return
  }
  func.func @transform_0(%arg0: i32, %arg1: i32, %arg2: i32) -> (i32, i32) {
    %c0_i32 = arith.constant 0 : i32
    return %arg1, %arg2 : i32, i32
  }
  func.func @transform_1(%arg0: i32, %arg1: i32, %arg2: i32) -> (i32, i32) {
    %c0_i32 = arith.constant 0 : i32
    %c0_i32_0 = arith.constant 0 : i32
    %c0_i32_1 = arith.constant 0 : i32
    return %c0_i32, %c0_i32_0 : i32, i32
  }
  func.func @transform_2(%arg0: i32, %arg1: i32, %arg2: i32) -> (i32, i32) {
    %c0_i32 = arith.constant 0 : i32
    %c0_i32_0 = arith.constant 0 : i32
    %c0_i32_1 = arith.constant 0 : i32
    return %c0_i32, %c0_i32_0 : i32, i32
  }
  func.func @transform_3(%arg0: i32, %arg1: i32, %arg2: i32) -> (i32, i32) {
    %c0_i32 = arith.constant 0 : i32
    %c0_i32_0 = arith.constant 0 : i32
    %c0_i32_1 = arith.constant 0 : i32
    return %c0_i32, %c0_i32_0 : i32, i32
  }
  func.func @transform_4(%arg0: i32, %arg1: i32, %arg2: i32) -> (i32, i32) {
    %c0_i32 = arith.constant 0 : i32
    %c0_i32_0 = arith.constant 0 : i32
    %c0_i32_1 = arith.constant 0 : i32
    return %c0_i32, %c0_i32_0 : i32, i32
  }
  func.func @transform_5(%arg0: i32, %arg1: i32, %arg2: i32) -> (i32, i32) {
    %c0_i32 = arith.constant 0 : i32
    %c0_i32_0 = arith.constant 0 : i32
    return %arg1, %c0_i32 : i32, i32
  }
  func.func @transform_6(%arg0: i32, %arg1: i32, %arg2: i32) -> (i32, i32) {
    %c0_i32 = arith.constant 0 : i32
    %c0_i32_0 = arith.constant 0 : i32
    return %arg1, %c0_i32 : i32, i32
  }
}

</mosaic_0001>

<llo_original>
// kernel: tpu_custom_call.1
$region0: #{tpu_custom_call.1}
  #allocation0 [shape = 'u32[]', space=smem, size = 0x4, offset = 0x4, fixed_abs, tag = 'smem constant byte address 0x4 - core index']
  #allocation1 [shape = 'u32[144,128]{1,0:T(1,128)}', space=vmem, size = 0x12000, scoped, tag = 'internal scratch']
  #allocation2 [shape = 'f32[128,128]{1,0:T(8,128)}', space=vmem, size = 0x10000, scoped, tag = 'scratch operand']
  #allocation3 [shape = 'bf16[512,128]{1,0:T(16,128)(2,1)}', space=vmem, size = 0x20000, scoped, tag = 'scratch operand']
  #allocation4 [shape = 'f32[256,128]{1,0:T(8,128)}', space=vmem, size = 0x20000, scoped, tag = 'scratch operand']
  %s0 = inlined_call_operand.hbm [shape: bf16[256,256], index: 0, kind: input, shape index: {}]
  %s1 = inlined_call_operand.hbm [shape: f32[256,128], index: 1, kind: input, shape index: {}]
  %s2 = inlined_call_operand.hbm [shape: f32[128,128], index: 2, kind: input, shape index: {}]
  %s3 = inlined_call_operand.hbm [shape: f32[128,128], index: 3, kind: input, shape index: {}]
  %s4 = inlined_call_operand.hbm [shape: f32[2,128], index: 4, kind: input, shape index: {}]
  %s5 = inlined_call_operand.hbm [shape: f32[256,128], index: 5, kind: output, shape index: {0}]
  %s6 = inlined_call_operand.hbm [shape: f32[256,128], index: 6, kind: output, shape index: {1}]
  %7 = xla_tuple %s5, %s6
  %s8 = sld [smem:[#allocation0]]
  $region97: #{tpu_custom_call.1} parent=0
    _
  %s10 = ssub.s32 1, %s8
  %s11 = scalar_select 0, %s10, %s8
  $region1: #{tpu_custom_call.1} parent=0
    #allocation5 [shape = 'u8[65536]{0}', space=vmem, size = 0x10000, scoped, tag = 'input window, operand 0']
    #allocation6 [shape = 's32[2]{0}', space=sflag, size = 0x8, scoped, tag = 'scoped memory for tpu_custom_call.1']
    #allocation7 [shape = 's32[2]{0}', space=sflag, size = 0x8, scoped, tag = 'scoped memory for tpu_custom_call.1']
    #allocation8 [shape = 'u8[131072]{0}', space=vmem, size = 0x20000, scoped, tag = 'input window, operand 1, single buffered']
    #allocation9 [shape = 's32[1]{0}', space=sflag, size = 0x4, scoped, tag = 'scoped memory for tpu_custom_call.1']
    #allocation10 [shape = 'u8[65536]{0}', space=vmem, size = 0x10000, scoped, tag = 'input window, operand 2, single buffered']
    #allocation11 [shape = 'u8[65536]{0}', space=vmem, size = 0x10000, scoped, tag = 'input window, operand 3, single buffered']
    #allocation12 [shape = 's32[1]{0}', space=sflag, size = 0x4, scoped, tag = 'scoped memory for tpu_custom_call.1']
    #allocation13 [shape = 'u8[1024]{0}', space=vmem, size = 0x400, scoped, tag = 'input window, operand 4, single buffered']
    #allocation14 [shape = 'u8[131072]{0}', space=vmem, size = 0x20000, scoped, tag = 'output window, operand 0']
    #allocation15 [shape = 'u8[131072]{0}', space=vmem, size = 0x20000, scoped, tag = 'output window, operand 1']
    #allocation16 [shape = 's32[2]{0}', space=sflag, size = 0x8, scoped, tag = 'scoped memory for tpu_custom_call.1']
    %12 = vsyncpa [#allocation6], 0
    %s13 = scalar_lea.sflag [#allocation6], 1
    %14 = vsyncpa %s13, 0
    %15 = vsyncpa [#allocation9], 0
    %16 = vsyncpa [#allocation12], 0
    %17 = vsyncpa [#allocation7], 0
    %s18 = scalar_lea.sflag [#allocation7], 1
    %19 = vsyncpa %s18, 0
    %20 = vsyncpa [#allocation16], 0
    %s21 = scalar_lea.sflag [#allocation16], 1
    %22 = vsyncpa %s21, 0
    loop: start=0, step=1, limit=10
    $region2: #{tpu_custom_call.1} parent=1 // loop_pre_header
      _
    $region3: #{tpu_custom_call.1} parent=1 // loop_header
      %s24 = sphi 0, %s28
      %p25 = scmp.ge.s32.totalorder %s24, 10
      %s31 = sphi 0, %s50
      %s32 = sphi 0, %s46
      %s33 = sphi 0, %s42
      %s34 = sphi 0, %s31
      %s35 = sphi 0, %s32
      %s36 = sphi 0, %s33
      %s37 = sphi 0, %s34
      %s38 = sphi 0, %s35
      %s39 = sphi 0, %s36
      %s55 = sphi 0, %s57
      %s58 = sphi 0, %s55
      %s59 = sphi 0, %s58
      %s75 = sphi 0, %s59
      %s79 = sphi 0, %s79
      %s81 = sphi 0, %s79
      %s82 = sphi 0, %s81
      %s96 = sphi 0, %s82
      %s100 = sphi 0, %s100
      %s102 = sphi 0, %s100
      %s103 = sphi 0, %s102
      %s117 = sphi 0, %s103
      %s121 = sphi 0, %s121
      %s123 = sphi 0, %s121
      %s124 = sphi 0, %s123
      %s138 = sphi 0, %s124
      %s142 = sphi 0, %s142
      %s144 = sphi 0, %s142
      %s145 = sphi 0, %s144
      %s159 = sphi 0, %s145
      %s165 = sphi 0, %s167
      %s168 = sphi 0, %s165
      %s169 = sphi 0, %s168
      %s185 = sphi 0, %s169
      %s191 = sphi 0, %s193
      %s194 = sphi 0, %s191
      %s195 = sphi 0, %s194
      %s211 = sphi 0, %s195
    $region4: #{tpu_custom_call.1} parent=1 // loop_header_branch
      %27 = sbr.rel (%p25) target = $region8
    $region5: #{tpu_custom_call.1} parent=1 // loop_body
      %s29 = ssub.s32 %s24, 1
      %s30 = ssub.s32 %s24, 2
      %s40 = sadd.s32 1, %s33
      %p41 = scmp.ge.s32.totalorder %s40, 2
      %s42 = scalar_select %p41, 0, %s40
      %s43 = sadd.s32 1, %s32
      %s44 = scalar_select %p41, %s43, %s32
      %p45 = scmp.ge.s32.totalorder %s44, 2
      %s46 = scalar_select %p45, 0, %s44
      %s47 = sadd.s32 1, %s31
      %s48 = scalar_select %p45, %s47, %s31
      %p49 = scmp.ge.s32.totalorder %s48, 2
      %s50 = scalar_select %p49, 0, %s48
      %s51 = ssub.s32 %s32, %s46
      %s52 = ssub.s32 %s33, %s42
      %s53 = sor.u32 %s51, %s52
      %p54 = scmp.eq.s32.totalorder %s53, 0
      %s56 = sadd.s32 %s55, 1
      %s57 = scalar_select %p54, %s55, %s56
      %p60 = pneg %p54
      %p61 = scmp.eq.s32.totalorder %s24, 7
      %p62 = por %p60, %p61
      %p63 = scmp.ne.s32.totalorder %s55, %s58
      %p64 = scmp.eq.s32.totalorder %s24, 0
      %p65 = por %p63, %p64
      %p66 = scmp.ne.s32.totalorder %s55, %s58
      %p67 = scmp.eq.s32.totalorder %s29, 7
      %p68 = por %p66, %p67
      %p69 = scmp.ne.s32.totalorder %s58, %s59
      %p70 = scmp.eq.s32.totalorder %s29, 0
      %p71 = por %p69, %p70
      %p72 = scmp.ne.s32.totalorder %s58, %s59
      %p73 = scmp.eq.s32.totalorder %s30, 7
      %p74 = por %p72, %p73
      %p76 = scmp.ne.s32.totalorder %s59, %s75
      %p77 = scmp.eq.s32.totalorder %s30, 0
      %p78 = por %p76, %p77
      %s80 = sadd.s32 %s79, 1
      %p83 = scmp.eq.s32.totalorder %s24, 7
      %p84 = scmp.ne.s32.totalorder %s79, %s81
      %p85 = scmp.eq.s32.totalorder %s24, 0
      %p86 = por %p84, %p85
      %p87 = scmp.ne.s32.totalorder %s79, %s81
      %p88 = scmp.eq.s32.totalorder %s29, 7
      %p89 = por %p87, %p88
      %p90 = scmp.ne.s32.totalorder %s81, %s82
      %p91 = scmp.eq.s32.totalorder %s29, 0
      %p92 = por %p90, %p91
      %p93 = scmp.ne.s32.totalorder %s81, %s82
      %p94 = scmp.eq.s32.totalorder %s30, 7
      %p95 = por %p93, %p94
      %p97 = scmp.ne.s32.totalorder %s82, %s96
      %p98 = scmp.eq.s32.totalorder %s30, 0
      %p99 = por %p97, %p98
      %s101 = sadd.s32 %s100, 1
      %p104 = scmp.eq.s32.totalorder %s24, 7
      %p105 = scmp.ne.s32.totalorder %s100, %s102
      %p106 = scmp.eq.s32.totalorder %s24, 0
      %p107 = por %p105, %p106
      %p108 = scmp.ne.s32.totalorder %s100, %s102
      %p109 = scmp.eq.s32.totalorder %s29, 7
      %p110 = por %p108, %p109
      %p111 = scmp.ne.s32.totalorder %s102, %s103
      %p112 = scmp.eq.s32.totalorder %s29, 0
      %p113 = por %p111, %p112
      %p114 = scmp.ne.s32.totalorder %s102, %s103
      %p115 = scmp.eq.s32.totalorder %s30, 7
      %p116 = por %p114, %p115
      %p118 = scmp.ne.s32.totalorder %s103, %s117
      %p119 = scmp.eq.s32.totalorder %s30, 0
      %p120 = por %p118, %p119
      %s122 = sadd.s32 %s121, 1
      %p125 = scmp.eq.s32.totalorder %s24, 7
      %p126 = scmp.ne.s32.totalorder %s121, %s123
      %p127 = scmp.eq.s32.totalorder %s24, 0
      %p128 = por %p126, %p127
      %p129 = scmp.ne.s32.totalorder %s121, %s123
      %p130 = scmp.eq.s32.totalorder %s29, 7
      %p131 = por %p129, %p130
      %p132 = scmp.ne.s32.totalorder %s123, %s124
      %p133 = scmp.eq.s32.totalorder %s29, 0
      %p134 = por %p132, %p133
      %p135 = scmp.ne.s32.totalorder %s123, %s124
      %p136 = scmp.eq.s32.totalorder %s30, 7
      %p137 = por %p135, %p136
      %p139 = scmp.ne.s32.totalorder %s124, %s138
      %p140 = scmp.eq.s32.totalorder %s30, 0
      %p141 = por %p139, %p140
      %s143 = sadd.s32 %s142, 1
      %p146 = scmp.eq.s32.totalorder %s24, 7
      %p147 = scmp.ne.s32.totalorder %s142, %s144
      %p148 = scmp.eq.s32.totalorder %s24, 0
      %p149 = por %p147, %p148
      %p150 = scmp.ne.s32.totalorder %s142, %s144
      %p151 = scmp.eq.s32.totalorder %s29, 7
      %p152 = por %p150, %p151
      %p153 = scmp.ne.s32.totalorder %s144, %s145
      %p154 = scmp.eq.s32.totalorder %s29, 0
      %p155 = por %p153, %p154
      %p156 = scmp.ne.s32.totalorder %s144, %s145
      %p157 = scmp.eq.s32.totalorder %s30, 7
      %p158 = por %p156, %p157
      %p160 = scmp.ne.s32.totalorder %s145, %s159
      %p161 = scmp.eq.s32.totalorder %s30, 0
      %p162 = por %p160, %p161
      %s163 = ssub.s32 %s32, %s46
      %p164 = scmp.eq.s32.totalorder %s163, 0
      %s166 = sadd.s32 %s165, 1
      %s167 = scalar_select %p164, %s165, %s166
      %p170 = pneg %p164
      %p171 = scmp.eq.s32.totalorder %s24, 7
      %p172 = por %p170, %p171
      %p173 = scmp.ne.s32.totalorder %s165, %s168
      %p174 = scmp.eq.s32.totalorder %s24, 0
      %p175 = por %p173, %p174
      %p176 = scmp.ne.s32.totalorder %s165, %s168
      %p177 = scmp.eq.s32.totalorder %s29, 7
      %p178 = por %p176, %p177
      %p179 = scmp.ne.s32.totalorder %s168, %s169
      %p180 = scmp.eq.s32.totalorder %s29, 0
      %p181 = por %p179, %p180
      %p182 = scmp.ne.s32.totalorder %s168, %s169
      %p183 = scmp.eq.s32.totalorder %s30, 7
      %p184 = por %p182, %p183
      %p186 = scmp.ne.s32.totalorder %s169, %s185
      %p187 = scmp.eq.s32.totalorder %s30, 0
      %p188 = por %p186, %p187
      %s189 = ssub.s32 %s32, %s46
      %p190 = scmp.eq.s32.totalorder %s189, 0
      %s192 = sadd.s32 %s191, 1
      %s193 = scalar_select %p190, %s191, %s192
      %p196 = pneg %p190
      %p197 = scmp.eq.s32.totalorder %s24, 7
      %p198 = por %p196, %p197
      %p199 = scmp.ne.s32.totalorder %s191, %s194
      %p200 = scmp.eq.s32.totalorder %s24, 0
      %p201 = por %p199, %p200
      %p202 = scmp.ne.s32.totalorder %s191, %s194
      %p203 = scmp.eq.s32.totalorder %s29, 7
      %p204 = por %p202, %p203
      %p205 = scmp.ne.s32.totalorder %s194, %s195
      %p206 = scmp.eq.s32.totalorder %s29, 0
      %p207 = por %p205, %p206
      %p208 = scmp.ne.s32.totalorder %s194, %s195
      %p209 = scmp.eq.s32.totalorder %s30, 7
      %p210 = por %p208, %p209
      %p212 = scmp.ne.s32.totalorder %s195, %s211
      %p213 = scmp.eq.s32.totalorder %s30, 0
      %p214 = por %p212, %p213
      %p215 = scmp.le.s32.totalorder 1, %s24
      %p216 = scmp.lt.s32.totalorder %s24, 9
      %p217 = pnand %p215, %p216
      %p218 = pneg %p217
      // Predicated region
      $region9: #{tpu_custom_call.1} parent=5 // pred_check
        _
      $region10: #{tpu_custom_call.1} parent=5 // pred_check_branch
        %220 = sbr.rel (%p217) target = $region12
      $region11: #{tpu_custom_call.1} parent=5 // pred_region
        %s221 = ssub.s32 %s24, 1
        // Predicated region
        $region13: #{tpu_custom_call.1} parent=11 // pred_check
          %p222 = pneg %p92
        $region14: #{tpu_custom_call.1} parent=11 // pred_check_branch
          %224 = sbr.rel (%p222) target = $region16
        $region15: #{tpu_custom_call.1} parent=11 // pred_region
          %s226 = ssub.s32 4096, 4096
          %227 = vsyncadd [#allocation9], %s226
          %s228 = sshll.u32 [#allocation8], 4
          %s229 = int_to_ptr.vmem [resolvable:$true] %s228
          %234 = dma.hbm_to_vmem [thread:$0]  %s1, 4096, %s229, [#allocation9], 128, 128, 8
        $region16: #{tpu_custom_call.1} parent=11 // pred_fallthru
          _
        // Predicated region
        $region17: #{tpu_custom_call.1} parent=11 // pred_check
          %p235 = pneg %p113
        $region18: #{tpu_custom_call.1} parent=11 // pred_check_branch
          %237 = sbr.rel (%p235) target = $region20
        $region19: #{tpu_custom_call.1} parent=11 // pred_region
          %s239 = ssub.s32 2048, 2048
          %240 = vsyncadd [#allocation9], %s239
          %s241 = sshll.u32 [#allocation10], 4
          %s242 = int_to_ptr.vmem [resolvable:$true] %s241
          %247 = dma.hbm_to_vmem [thread:$0]  %s2, 2048, %s242, [#allocation9], 128, 128, 8
        $region20: #{tpu_custom_call.1} parent=11 // pred_fallthru
          _
        // Predicated region
        $region21: #{tpu_custom_call.1} parent=11 // pred_check
          %p248 = pneg %p134
        $region22: #{tpu_custom_call.1} parent=11 // pred_check_branch
          %250 = sbr.rel (%p248) target = $region24
        $region23: #{tpu_custom_call.1} parent=11 // pred_region
          %s252 = ssub.s32 2048, 2048
          %253 = vsyncadd [#allocation12], %s252
          %s254 = sshll.u32 [#allocation11], 4
          %s255 = int_to_ptr.vmem [resolvable:$true] %s254
          %260 = dma.hbm_to_vmem [thread:$0]  %s3, 2048, %s255, [#allocation12], 128, 128, 8
        $region24: #{tpu_custom_call.1} parent=11 // pred_fallthru
          _
        // Predicated region
        $region25: #{tpu_custom_call.1} parent=11 // pred_check
          %p261 = pneg %p155
        $region26: #{tpu_custom_call.1} parent=11 // pred_check_branch
          %263 = sbr.rel (%p261) target = $region28
        $region27: #{tpu_custom_call.1} parent=11 // pred_region
          %s265 = ssub.s32 32, 32
          %266 = vsyncadd [#allocation12], %s265
          %s268 = sshll.u32 [#allocation13], 4
          %s269 = int_to_ptr.vmem [resolvable:$true] %s268
          %271 = dma.hbm_to_vmem [thread:$0]  %s4, 32, %s269, [#allocation12]
        $region28: #{tpu_custom_call.1} parent=11 // pred_fallthru
          _
      $region12: #{tpu_custom_call.1} parent=5 // pred_fallthru
        _
      %p272 = scmp.lt.s32.totalorder %s24, 8
      // Predicated region
      $region29: #{tpu_custom_call.1} parent=5 // pred_check
        %p273 = pneg %p272
      $region30: #{tpu_custom_call.1} parent=5 // pred_check_branch
        %275 = sbr.rel (%p273) target = $region32
      $region31: #{tpu_custom_call.1} parent=5 // pred_region
        // Predicated region
        $region33: #{tpu_custom_call.1} parent=31 // pred_check
          %p276 = pneg %p65
        $region34: #{tpu_custom_call.1} parent=31 // pred_check_branch
          %278 = sbr.rel (%p276) target = $region36
        $region35: #{tpu_custom_call.1} parent=31 // pred_region
          %s279 = sand.u32 %s55, 1
          %s280 = scalar_lea.sflag [#allocation6], %s279
          %s281 = sand.u32 %s55, 1
          %s282 = smul.addr %s281, 64
          %s283 = scalar_lea.vmem [#allocation5], %s282
          %s284 = smul.u32 16, %s32
          %s286 = ssub.s32 1024, 1024
          %287 = vsyncadd %s280, %s286
          %s288 = smul.addr %s284, 2
          %s289 = sadd.s32 %s33, %s288
          %s290 = smul.addr %s289, 64
          %s291 = scalar_lea.hbm %s0, %s290
          %s292 = sshll.u32 %s283, 4
          %s293 = int_to_ptr.vmem [resolvable:$true] %s292
          %298 = dma.hbm_to_vmem [thread:$0]  %s291, 1024, %s293, %s280, 128, 64, 4
        $region36: #{tpu_custom_call.1} parent=31 // pred_fallthru
          _
      $region32: #{tpu_custom_call.1} parent=5 // pred_fallthru
        _
      %p299 = scmp.le.s32.totalorder 1, %s24
      %p300 = scmp.lt.s32.totalorder %s24, 9
      %p301 = pnand %p299, %p300
      %p302 = pneg %p301
      // Predicated region
      $region37: #{tpu_custom_call.1} parent=5 // pred_check
        _
      $region38: #{tpu_custom_call.1} parent=5 // pred_check_branch
        %304 = sbr.rel (%p301) target = $region40
      $region39: #{tpu_custom_call.1} parent=5 // pred_region
        %s305 = ssub.s32 %s24, 1
        %s306 = sand.u32 %s58, 1
        %s307 = scalar_lea.sflag [#allocation6], %s306
        %s308 = sand.u32 %s58, 1
        %s309 = smul.addr %s308, 64
        %s310 = scalar_lea.vmem [#allocation5], %s309
        // Predicated region
        $region41: #{tpu_custom_call.1} parent=39 // pred_check
          %p311 = pneg %p71
        $region42: #{tpu_custom_call.1} parent=39 // pred_check_branch
          %313 = sbr.rel (%p311) target = $region44
        $region43: #{tpu_custom_call.1} parent=39 // pred_region
          %314 = dma.done %s307, 1024
        $region44: #{tpu_custom_call.1} parent=39 // pred_fallthru
          _
        // Predicated region
        $region45: #{tpu_custom_call.1} parent=39 // pred_check
          %p315 = pneg %p92
        $region46: #{tpu_custom_call.1} parent=39 // pred_check_branch
          %317 = sbr.rel (%p315) target = $region48
        $region47: #{tpu_custom_call.1} parent=39 // pred_region
          %318 = dma.done [#allocation9], 4096
        $region48: #{tpu_custom_call.1} parent=39 // pred_fallthru
          _
        // Predicated region
        $region49: #{tpu_custom_call.1} parent=39 // pred_check
          %p319 = pneg %p113
        $region50: #{tpu_custom_call.1} parent=39 // pred_check_branch
          %321 = sbr.rel (%p319) target = $region52
        $region51: #{tpu_custom_call.1} parent=39 // pred_region
          %322 = dma.done [#allocation9], 2048
        $region52: #{tpu_custom_call.1} parent=39 // pred_fallthru
          _
        // Predicated region
        $region53: #{tpu_custom_call.1} parent=39 // pred_check
          %p323 = pneg %p134
        $region54: #{tpu_custom_call.1} parent=39 // pred_check_branch
          %325 = sbr.rel (%p323) target = $region56
        $region55: #{tpu_custom_call.1} parent=39 // pred_region
          %326 = dma.done [#allocation12], 2048
        $region56: #{tpu_custom_call.1} parent=39 // pred_fallthru
          _
        // Predicated region
        $region57: #{tpu_custom_call.1} parent=39 // pred_check
          %p327 = pneg %p155
        $region58: #{tpu_custom_call.1} parent=39 // pred_check_branch
          %329 = sbr.rel (%p327) target = $region60
        $region59: #{tpu_custom_call.1} parent=39 // pred_region
          %330 = dma.done [#allocation12], 32
        $region60: #{tpu_custom_call.1} parent=39 // pred_fallthru
          _
        %s331 = sand.u32 %s58, 1
        %s332 = scalar_lea.sflag [#allocation6], %s331
        %s333 = sand.u32 %s58, 1
        %s334 = smul.addr %s333, 64
        %s335 = scalar_lea.vmem [#allocation5], %s334
        %p336 = pneg %p71
        %p337 = pneg %p68
        %p338 = pneg %p92
        %p339 = pneg %p89
        %p340 = pneg %p113
        %p341 = pneg %p110
        %p342 = pneg %p134
        %p343 = pneg %p131
        %p344 = pneg %p155
        %p345 = pneg %p152
        %p346 = pneg %p181
        %p347 = pneg %p178
        %s348 = sand.u32 %s168, 1
        %s349 = scalar_lea.sflag [#allocation7], %s348
        %s350 = sand.u32 %s168, 1
        %s351 = smul.addr %s350, 128
        %s352 = scalar_lea.vmem [#allocation14], %s351
        %p353 = pneg %p207
        %p354 = pneg %p204
        %s355 = sand.u32 %s194, 1
        %s356 = scalar_lea.sflag [#allocation16], %s355
        %s357 = sand.u32 %s194, 1
        %s358 = smul.addr %s357, 128
        %s359 = scalar_lea.vmem [#allocation15], %s358
        %s360 = smul.u32 16, %s35
        %s361 = smul.u32 16, %s35
        %s362 = smul.u32 16, %s35
        %p364 = scmp.eq.s32.totalorder %s34, 0
        %p365 = scmp.eq.s32.totalorder %s35, 0
        %p366 = pnand %p364, %p365
        %p367 = pneg %p366
        %p368 = scmp.eq.s32.totalorder %s36, 0
        %p369 = pnand %p367, %p368
        %p370 = pneg %p369
        // Predicated region
        $region61: #{tpu_custom_call.1} parent=39 // pred_check
          _
        $region62: #{tpu_custom_call.1} parent=39 // pred_check_branch
          %372 = sbr.rel (%p369) target = $region64
        $region63: #{tpu_custom_call.1} parent=39 // pred_region
          %v373 = vld [vmem:[#allocation8] sm:$0xff]
          %v374 = vld [vmem:[#allocation8 + $0x8] sm:$0xff]
          %v375 = vld [vmem:[#allocation8 + $0x10] sm:$0xff]
          %v376 = vld [vmem:[#allocation8 + $0x18] sm:$0xff]
          %v377 = vld [vmem:[#allocation8 + $0x20] sm:$0xff]
          %v378 = vld [vmem:[#allocation8 + $0x28] sm:$0xff]
          %v379 = vld [vmem:[#allocation8 + $0x30] sm:$0xff]
          %v380 = vld [vmem:[#allocation8 + $0x38] sm:$0xff]
          %v381 = vld [vmem:[#allocation8 + $0x40] sm:$0xff]
          %v382 = vld [vmem:[#allocation8 + $0x48] sm:$0xff]
          %v383 = vld [vmem:[#allocation8 + $0x50] sm:$0xff]
          %v384 = vld [vmem:[#allocation8 + $0x58] sm:$0xff]
          %v385 = vld [vmem:[#allocation8 + $0x60] sm:$0xff]
          %v386 = vld [vmem:[#allocation8 + $0x68] sm:$0xff]
          %v387 = vld [vmem:[#allocation8 + $0x70] sm:$0xff]
          %v388 = vld [vmem:[#allocation8 + $0x78] sm:$0xff]
          %v389 = vld [vmem:[#allocation8 + $0x80] sm:$0xff]
          %v390 = vld [vmem:[#allocation8 + $0x88] sm:$0xff]
          %v391 = vld [vmem:[#allocation8 + $0x90] sm:$0xff]
          %v392 = vld [vmem:[#allocation8 + $0x98] sm:$0xff]
          %v393 = vld [vmem:[#allocation8 + $0xa0] sm:$0xff]
          %v394 = vld [vmem:[#allocation8 + $0xa8] sm:$0xff]
          %v395 = vld [vmem:[#allocation8 + $0xb0] sm:$0xff]
          %v396 = vld [vmem:[#allocation8 + $0xb8] sm:$0xff]
          %v397 = vld [vmem:[#allocation8 + $0xc0] sm:$0xff]
          %v398 = vld [vmem:[#allocation8 + $0xc8] sm:$0xff]
          %v399 = vld [vmem:[#allocation8 + $0xd0] sm:$0xff]
          %v400 = vld [vmem:[#allocation8 + $0xd8] sm:$0xff]
          %v401 = vld [vmem:[#allocation8 + $0xe0] sm:$0xff]
          %v402 = vld [vmem:[#allocation8 + $0xe8] sm:$0xff]
          %v403 = vld [vmem:[#allocation8 + $0xf0] sm:$0xff]
          %v404 = vld [vmem:[#allocation8 + $0xf8] sm:$0xff]
          %vm405 = vcmp.ne.f32.partialorder %v373, %v373
          %vm406 = vcmp.ne.f32.partialorder %v374, %v374
          %vm407 = vcmp.ne.f32.partialorder %v375, %v375
          %vm408 = vcmp.ne.f32.partialorder %v376, %v376
          %vm409 = vcmp.ne.f32.partialorder %v377, %v377
          %vm410 = vcmp.ne.f32.partialorder %v378, %v378
          %vm411 = vcmp.ne.f32.partialorder %v379, %v379
          %vm412 = vcmp.ne.f32.partialorder %v380, %v380
          %vm413 = vcmp.ne.f32.partialorder %v381, %v381
          %vm414 = vcmp.ne.f32.partialorder %v382, %v382
          %vm415 = vcmp.ne.f32.partialorder %v383, %v383
          %vm416 = vcmp.ne.f32.partialorder %v384, %v384
          %vm417 = vcmp.ne.f32.partialorder %v385, %v385
          %vm418 = vcmp.ne.f32.partialorder %v386, %v386
          %vm419 = vcmp.ne.f32.partialorder %v387, %v387
          %vm420 = vcmp.ne.f32.partialorder %v388, %v388
          %vm421 = vcmp.ne.f32.partialorder %v389, %v389
          %vm422 = vcmp.ne.f32.partialorder %v390, %v390
          %vm423 = vcmp.ne.f32.partialorder %v391, %v391
          %vm424 = vcmp.ne.f32.partialorder %v392, %v392
          %vm425 = vcmp.ne.f32.partialorder %v393, %v393
          %vm426 = vcmp.ne.f32.partialorder %v394, %v394
          %vm427 = vcmp.ne.f32.partialorder %v395, %v395
          %vm428 = vcmp.ne.f32.partialorder %v396, %v396
          %vm429 = vcmp.ne.f32.partialorder %v397, %v397
          %vm430 = vcmp.ne.f32.partialorder %v398, %v398
          %vm431 = vcmp.ne.f32.partialorder %v399, %v399
          %vm432 = vcmp.ne.f32.partialorder %v400, %v400
          %vm433 = vcmp.ne.f32.partialorder %v401, %v401
          %vm434 = vcmp.ne.f32.partialorder %v402, %v402
          %vm435 = vcmp.ne.f32.partialorder %v403, %v403
          %vm436 = vcmp.ne.f32.partialorder %v404, %v404
          %v437 = vsel %vm405, 0.0, %v373
          %v438 = vsel %vm406, 0.0, %v374
          %v439 = vsel %vm407, 0.0, %v375
          %v440 = vsel %vm408, 0.0, %v376
          %v441 = vsel %vm409, 0.0, %v377
          %v442 = vsel %vm410, 0.0, %v378
          %v443 = vsel %vm411, 0.0, %v379
          %v444 = vsel %vm412, 0.0, %v380
          %v445 = vsel %vm413, 0.0, %v381
          %v446 = vsel %vm414, 0.0, %v382
          %v447 = vsel %vm415, 0.0, %v383
          %v448 = vsel %vm416, 0.0, %v384
          %v449 = vsel %vm417, 0.0, %v385
          %v450 = vsel %vm418, 0.0, %v386
          %v451 = vsel %vm419, 0.0, %v387
          %v452 = vsel %vm420, 0.0, %v388
          %v453 = vsel %vm421, 0.0, %v389
          %v454 = vsel %vm422, 0.0, %v390
          %v455 = vsel %vm423, 0.0, %v391
          %v456 = vsel %vm424, 0.0, %v392
          %v457 = vsel %vm425, 0.0, %v393
          %v458 = vsel %vm426, 0.0, %v394
          %v459 = vsel %vm427, 0.0, %v395
          %v460 = vsel %vm428, 0.0, %v396
          %v461 = vsel %vm429, 0.0, %v397
          %v462 = vsel %vm430, 0.0, %v398
          %v463 = vsel %vm431, 0.0, %v399
          %v464 = vsel %vm432, 0.0, %v400
          %v465 = vsel %vm433, 0.0, %v401
          %v466 = vsel %vm434, 0.0, %v402
          %v467 = vsel %vm435, 0.0, %v403
          %v468 = vsel %vm436, 0.0, %v404
          %v469 = vld [vmem:[#allocation10] sm:$0xff]
          %v470 = vld [vmem:[#allocation10 + $0x8] sm:$0xff]
          %v471 = vld [vmem:[#allocation10 + $0x10] sm:$0xff]
          %v472 = vld [vmem:[#allocation10 + $0x18] sm:$0xff]
          %v473 = vld [vmem:[#allocation10 + $0x20] sm:$0xff]
          %v474 = vld [vmem:[#allocation10 + $0x28] sm:$0xff]
          %v475 = vld [vmem:[#allocation10 + $0x30] sm:$0xff]
          %v476 = vld [vmem:[#allocation10 + $0x38] sm:$0xff]
          %v477 = vld [vmem:[#allocation10 + $0x40] sm:$0xff]
          %v478 = vld [vmem:[#allocation10 + $0x48] sm:$0xff]
          %v479 = vld [vmem:[#allocation10 + $0x50] sm:$0xff]
          %v480 = vld [vmem:[#allocation10 + $0x58] sm:$0xff]
          %v481 = vld [vmem:[#allocation10 + $0x60] sm:$0xff]
          %v482 = vld [vmem:[#allocation10 + $0x68] sm:$0xff]
          %v483 = vld [vmem:[#allocation10 + $0x70] sm:$0xff]
          %v484 = vld [vmem:[#allocation10 + $0x78] sm:$0xff]
          %485 = vmatprep.subr.mxu0 0.0
          %486 = vmatpush1.msra.mxu0 %v469
          %487 = vmatprep.subr.mxu0 0.0
          %488 = vmatpush1.msra.mxu0 %v470
          %489 = vmatprep.subr.mxu0 0.0
          %490 = vmatpush1.msra.mxu0 %v471
          %491 = vmatprep.subr.mxu0 0.0
          %492 = vmatpush1.msra.mxu0 %v472
          %493 = vmatprep.subr.mxu0 0.0
          %494 = vmatpush1.msra.mxu0 %v473
          %495 = vmatprep.subr.mxu0 0.0
          %496 = vmatpush1.msra.mxu0 %v474
          %497 = vmatprep.subr.mxu0 0.0
          %498 = vmatpush1.msra.mxu0 %v475
          %499 = vmatprep.subr.mxu0 0.0
          %500 = vmatpush1.msra.mxu0 %v476
          %501 = vmatprep.subr.mxu0 0.0
          %502 = vmatpush1.msra.mxu0 %v477
          %503 = vmatprep.subr.mxu0 0.0
          %504 = vmatpush1.msra.mxu0 %v478
          %505 = vmatprep.subr.mxu0 0.0
          %506 = vmatpush1.msra.mxu0 %v479
          %507 = vmatprep.subr.mxu0 0.0
          %508 = vmatpush1.msra.mxu0 %v480
          %509 = vmatprep.subr.mxu0 0.0
          %510 = vmatpush1.msra.mxu0 %v481
          %511 = vmatprep.subr.mxu0 0.0
          %512 = vmatpush1.msra.mxu0 %v482
          %513 = vmatprep.subr.mxu0 0.0
          %514 = vmatpush1.msra.mxu0 %v483
          %515 = vmatprep.subr.mxu0 0.0
          %516 = vmatpush1.msra.mxu0 %v484
          %517 = vmatprep.subr.mxu0 0.0
          %518 = vmatpush1.msra.mxu0 0.0
          %519 = vmatprep.subr.mxu0 0.0
          %520 = vmatpush1.msra.mxu0 0.0
          %521 = vmatprep.subr.mxu0 0.0
          %522 = vmatpush1.msra.mxu0 0.0
          %523 = vmatprep.subr.mxu0 0.0
          %524 = vmatpush1.msra.mxu0 0.0
          %525 = vmatprep.subr.mxu0 0.0
          %526 = vmatpush1.msra.mxu0 0.0
          %527 = vmatprep.subr.mxu0 0.0
          %528 = vmatpush1.msra.mxu0 0.0
          %529 = vmatprep.subr.mxu0 0.0
          %530 = vmatpush1.msra.mxu0 0.0
          %531 = vmatprep.subr.mxu0 0.0
          %532 = vmatpush1.msra.mxu0 0.0
          %533 = vmatprep.subr.mxu0 0.0
          %534 = vmatpush1.msra.mxu0 0.0
          %535 = vmatprep.subr.mxu0 0.0
          %536 = vmatpush1.msra.mxu0 0.0
          %537 = vmatprep.subr.mxu0 0.0
          %538 = vmatpush1.msra.mxu0 0.0
          %539 = vmatprep.subr.mxu0 0.0
          %540 = vmatpush1.msra.mxu0 0.0
          %541 = vmatprep.subr.mxu0 0.0
          %542 = vmatpush1.msra.mxu0 0.0
          %543 = vmatprep.subr.mxu0 0.0
          %544 = vmatpush1.msra.mxu0 0.0
          %545 = vmatprep.subr.mxu0 0.0
          %546 = vmatpush1.msra.mxu0 0.0
          %547 = vmatprep.subr.mxu0 0.0
          %548 = vmatpush1.msra.mxu0 0.0
          %549 = vmatprep.mubr.f32.mxu0 0.0
          %550 = vmatmul.mubr.f32.gmra.mrb[0].mxu0 %v437
          %v551 = vpop.f32.mrb[0].mxu0
          %v552 = vadd.f32 0.0, %v551
          %v553 = vpop.f32.mrb[0].mxu0
          %554 = vmatprep.mubr.f32.mxu0 0.0
          %555 = vmatmul.mubr.f32.gmra.mrb[0].mxu0 %v438
          %v556 = vpop.f32.mrb[0].mxu0
          %v557 = vadd.f32 0.0, %v556
          %v558 = vpop.f32.mrb[0].mxu0
          %559 = vmatprep.mubr.f32.mxu0 0.0
          %560 = vmatmul.mubr.f32.gmra.mrb[0].mxu0 %v439
          %v561 = vpop.f32.mrb[0].mxu0
          %v562 = vadd.f32 0.0, %v561
          %v563 = vpop.f32.mrb[0].mxu0
          %564 = vmatprep.mubr.f32.mxu0 0.0
          %565 = vmatmul.mubr.f32.gmra.mrb[0].mxu0 %v440
          %v566 = vpop.f32.mrb[0].mxu0
          %v567 = vadd.f32 0.0, %v566
          %v568 = vpop.f32.mrb[0].mxu0
          %569 = vmatprep.mubr.f32.mxu0 0.0
          %570 = vmatmul.mubr.f32.gmra.mrb[0].mxu0 %v441
          %v571 = vpop.f32.mrb[0].mxu0
          %v572 = vadd.f32 0.0, %v571
          %v573 = vpop.f32.mrb[0].mxu0
          %574 = vmatprep.mubr.f32.mxu0 0.0
          %575 = vmatmul.mubr.f32.gmra.mrb[0].mxu0 %v442
          %v576 = vpop.f32.mrb[0].mxu0
          %v577 = vadd.f32 0.0, %v576
          %v578 = vpop.f32.mrb[0].mxu0
          %579 = vmatprep.mubr.f32.mxu0 0.0
          %580 = vmatmul.mubr.f32.gmra.mrb[0].mxu0 %v443
          %v581 = vpop.f32.mrb[0].mxu0
          %v582 = vadd.f32 0.0, %v581
          %v583 = vpop.f32.mrb[0].mxu0
          %584 = vmatprep.mubr.f32.mxu0 0.0
          %585 = vmatmul.mubr.f32.gmra.mrb[0].mxu0 %v444
          %v586 = vpop.f32.mrb[0].mxu0
          %v587 = vadd.f32 0.0, %v586
          %v588 = vpop.f32.mrb[0].mxu0
          %589 = vmatprep.mubr.f32.mxu0 0.0
          %590 = vmatmul.mubr.f32.gmra.mrb[0].mxu0 %v445
          %v591 = vpop.f32.mrb[0].mxu0
          %v592 = vadd.f32 0.0, %v591
          %v593 = vpop.f32.mrb[0].mxu0
          %594 = vmatprep.mubr.f32.mxu0 0.0
          %595 = vmatmul.mubr.f32.gmra.mrb[0].mxu0 %v446
          %v596 = vpop.f32.mrb[0].mxu0
          %v597 = vadd.f32 0.0, %v596
          %v598 = vpop.f32.mrb[0].mxu0
          %599 = vmatprep.mubr.f32.mxu0 0.0
          %600 = vmatmul.mubr.f32.gmra.mrb[0].mxu0 %v447
          %v601 = vpop.f32.mrb[0].mxu0
          %v602 = vadd.f32 0.0, %v601
          %v603 = vpop.f32.mrb[0].mxu0
          %604 = vmatprep.mubr.f32.mxu0 0.0
          %605 = vmatmul.mubr.f32.gmra.mrb[0].mxu0 %v448
          %v606 = vpop.f32.mrb[0].mxu0
          %v607 = vadd.f32 0.0, %v606
          %v608 = vpop.f32.mrb[0].mxu0
          %609 = vmatprep.mubr.f32.mxu0 0.0
          %610 = vmatmul.mubr.f32.gmra.mrb[0].mxu0 %v449
          %v611 = vpop.f32.mrb[0].mxu0
          %v612 = vadd.f32 0.0, %v611
          %v613 = vpop.f32.mrb[0].mxu0
          %614 = vmatprep.mubr.f32.mxu0 0.0
          %615 = vmatmul.mubr.f32.gmra.mrb[0].mxu0 %v450
          %v616 = vpop.f32.mrb[0].mxu0
          %v617 = vadd.f32 0.0, %v616
          %v618 = vpop.f32.mrb[0].mxu0
          %619 = vmatprep.mubr.f32.mxu0 0.0
          %620 = vmatmul.mubr.f32.gmra.mrb[0].mxu0 %v451
          %v621 = vpop.f32.mrb[0].mxu0
          %v622 = vadd.f32 0.0, %v621
          %v623 = vpop.f32.mrb[0].mxu0
          %624 = vmatprep.mubr.f32.mxu0 0.0
          %625 = vmatmul.mubr.f32.gmra.mrb[0].mxu0 %v452
          %v626 = vpop.f32.mrb[0].mxu0
          %v627 = vadd.f32 0.0, %v626
          %v628 = vpop.f32.mrb[0].mxu0
          %629 = vmatprep.mubr.f32.mxu0 0.0
          %630 = vmatmul.mubr.f32.gmra.mrb[0].mxu0 %v453
          %v631 = vpop.f32.mrb[0].mxu0
          %v632 = vadd.f32 0.0, %v631
          %v633 = vpop.f32.mrb[0].mxu0
          %634 = vmatprep.mubr.f32.mxu0 0.0
          %635 = vmatmul.mubr.f32.gmra.mrb[0].mxu0 %v454
          %v636 = vpop.f32.mrb[0].mxu0
          %v637 = vadd.f32 0.0, %v636
          %v638 = vpop.f32.mrb[0].mxu0
          %639 = vmatprep.mubr.f32.mxu0 0.0
          %640 = vmatmul.mubr.f32.gmra.mrb[0].mxu0 %v455
          %v641 = vpop.f32.mrb[0].mxu0
          %v642 = vadd.f32 0.0, %v641
          %v643 = vpop.f32.mrb[0].mxu0
          %644 = vmatprep.mubr.f32.mxu0 0.0
          %645 = vmatmul.mubr.f32.gmra.mrb[0].mxu0 %v456
          %v646 = vpop.f32.mrb[0].mxu0
          %v647 = vadd.f32 0.0, %v646
          %v648 = vpop.f32.mrb[0].mxu0
          %649 = vmatprep.mubr.f32.mxu0 0.0
          %650 = vmatmul.mubr.f32.gmra.mrb[0].mxu0 %v457
          %v651 = vpop.f32.mrb[0].mxu0
          %v652 = vadd.f32 0.0, %v651
          %v653 = vpop.f32.mrb[0].mxu0
          %654 = vmatprep.mubr.f32.mxu0 0.0
          %655 = vmatmul.mubr.f32.gmra.mrb[0].mxu0 %v458
          %v656 = vpop.f32.mrb[0].mxu0
          %v657 = vadd.f32 0.0, %v656
          %v658 = vpop.f32.mrb[0].mxu0
          %659 = vmatprep.mubr.f32.mxu0 0.0
          %660 = vmatmul.mubr.f32.gmra.mrb[0].mxu0 %v459
          %v661 = vpop.f32.mrb[0].mxu0
          %v662 = vadd.f32 0.0, %v661
          %v663 = vpop.f32.mrb[0].mxu0
          %664 = vmatprep.mubr.f32.mxu0 0.0
          %665 = vmatmul.mubr.f32.gmra.mrb[0].mxu0 %v460
          %v666 = vpop.f32.mrb[0].mxu0
          %v667 = vadd.f32 0.0, %v666
          %v668 = vpop.f32.mrb[0].mxu0
          %669 = vmatprep.mubr.f32.mxu0 0.0
          %670 = vmatmul.mubr.f32.gmra.mrb[0].mxu0 %v461
          %v671 = vpop.f32.mrb[0].mxu0
          %v672 = vadd.f32 0.0, %v671
          %v673 = vpop.f32.mrb[0].mxu0
          %674 = vmatprep.mubr.f32.mxu0 0.0
          %675 = vmatmul.mubr.f32.gmra.mrb[0].mxu0 %v462
          %v676 = vpop.f32.mrb[0].mxu0
          %v677 = vadd.f32 0.0, %v676
          %v678 = vpop.f32.mrb[0].mxu0
          %679 = vmatprep.mubr.f32.mxu0 0.0
          %680 = vmatmul.mubr.f32.gmra.mrb[0].mxu0 %v463
          %v681 = vpop.f32.mrb[0].mxu0
          %v682 = vadd.f32 0.0, %v681
          %v683 = vpop.f32.mrb[0].mxu0
          %684 = vmatprep.mubr.f32.mxu0 0.0
          %685 = vmatmul.mubr.f32.gmra.mrb[0].mxu0 %v464
          %v686 = vpop.f32.mrb[0].mxu0
          %v687 = vadd.f32 0.0, %v686
          %v688 = vpop.f32.mrb[0].mxu0
          %689 = vmatprep.mubr.f32.mxu0 0.0
          %690 = vmatmul.mubr.f32.gmra.mrb[0].mxu0 %v465
          %v691 = vpop.f32.mrb[0].mxu0
          %v692 = vadd.f32 0.0, %v691
          %v693 = vpop.f32.mrb[0].mxu0
          %694 = vmatprep.mubr.f32.mxu0 0.0
          %695 = vmatmul.mubr.f32.gmra.mrb[0].mxu0 %v466
          %v696 = vpop.f32.mrb[0].mxu0
          %v697 = vadd.f32 0.0, %v696
          %v698 = vpop.f32.mrb[0].mxu0
          %699 = vmatprep.mubr.f32.mxu0 0.0
          %700 = vmatmul.mubr.f32.gmra.mrb[0].mxu0 %v467
          %v701 = vpop.f32.mrb[0].mxu0
          %v702 = vadd.f32 0.0, %v701
          %v703 = vpop.f32.mrb[0].mxu0
          %704 = vmatprep.mubr.f32.mxu0 0.0
          %705 = vmatmul.mubr.f32.gmra.mrb[0].mxu0 %v468
          %v706 = vpop.f32.mrb[0].mxu0
          %v707 = vadd.f32 0.0, %v706
          %v708 = vpop.f32.mrb[0].mxu0
          %709 = vdwg.mxu0
          %v710 = vpack.c.bf16 %v557, %v552
          %v711 = vpack.c.bf16 %v567, %v562
          %v712 = vpack.c.bf16 %v577, %v572
          %v713 = vpack.c.bf16 %v587, %v582
          %v714 = vpack.c.bf16 %v597, %v592
          %v715 = vpack.c.bf16 %v607, %v602
          %v716 = vpack.c.bf16 %v617, %v612
          %v717 = vpack.c.bf16 %v627, %v622
          %v718 = vpack.c.bf16 %v637, %v632
          %v719 = vpack.c.bf16 %v647, %v642
          %v720 = vpack.c.bf16 %v657, %v652
          %v721 = vpack.c.bf16 %v667, %v662
          %v722 = vpack.c.bf16 %v677, %v672
          %v723 = vpack.c.bf16 %v687, %v682
          %v724 = vpack.c.bf16 %v697, %v692
          %v725 = vpack.c.bf16 %v707, %v702
          %726 = vst [vmem:[#allocation3] sm:$0xff] %v710
          %727 = vst [vmem:[#allocation3 + $0x8] sm:$0xff] %v711
          %728 = vst [vmem:[#allocation3 + $0x10] sm:$0xff] %v712
          %729 = vst [vmem:[#allocation3 + $0x18] sm:$0xff] %v713
          %730 = vst [vmem:[#allocation3 + $0x20] sm:$0xff] %v714
          %731 = vst [vmem:[#allocation3 + $0x28] sm:$0xff] %v715
          %732 = vst [vmem:[#allocation3 + $0x30] sm:$0xff] %v716
          %733 = vst [vmem:[#allocation3 + $0x38] sm:$0xff] %v717
          %734 = vst [vmem:[#allocation3 + $0x40] sm:$0xff] %v718
          %735 = vst [vmem:[#allocation3 + $0x48] sm:$0xff] %v719
          %736 = vst [vmem:[#allocation3 + $0x50] sm:$0xff] %v720
          %737 = vst [vmem:[#allocation3 + $0x58] sm:$0xff] %v721
          %738 = vst [vmem:[#allocation3 + $0x60] sm:$0xff] %v722
          %739 = vst [vmem:[#allocation3 + $0x68] sm:$0xff] %v723
          %740 = vst [vmem:[#allocation3 + $0x70] sm:$0xff] %v724
          %741 = vst [vmem:[#allocation3 + $0x78] sm:$0xff] %v725
        $region64: #{tpu_custom_call.1} parent=39 // pred_fallthru
          _
        // Predicated region
        $region65: #{tpu_custom_call.1} parent=39 // pred_check
          %p742 = pneg %p368
        $region66: #{tpu_custom_call.1} parent=39 // pred_check_branch
          %744 = sbr.rel (%p742) target = $region68
        $region67: #{tpu_custom_call.1} parent=39 // pred_region
          %745 = vst [vmem:[#allocation2] sm:$0xff] 0.0
          %746 = vst [vmem:[#allocation2 + $0x8] sm:$0xff] 0.0
          %747 = vst [vmem:[#allocation2 + $0x10] sm:$0xff] 0.0
          %748 = vst [vmem:[#allocation2 + $0x18] sm:$0xff] 0.0
          %749 = vst [vmem:[#allocation2 + $0x20] sm:$0xff] 0.0
          %750 = vst [vmem:[#allocation2 + $0x28] sm:$0xff] 0.0
          %751 = vst [vmem:[#allocation2 + $0x30] sm:$0xff] 0.0
          %752 = vst [vmem:[#allocation2 + $0x38] sm:$0xff] 0.0
          %753 = vst [vmem:[#allocation2 + $0x40] sm:$0xff] 0.0
          %754 = vst [vmem:[#allocation2 + $0x48] sm:$0xff] 0.0
          %755 = vst [vmem:[#allocation2 + $0x50] sm:$0xff] 0.0
          %756 = vst [vmem:[#allocation2 + $0x58] sm:$0xff] 0.0
          %757 = vst [vmem:[#allocation2 + $0x60] sm:$0xff] 0.0
          %758 = vst [vmem:[#allocation2 + $0x68] sm:$0xff] 0.0
          %759 = vst [vmem:[#allocation2 + $0x70] sm:$0xff] 0.0
          %760 = vst [vmem:[#allocation2 + $0x78] sm:$0xff] 0.0
        $region68: #{tpu_custom_call.1} parent=39 // pred_fallthru
          _
        %s761 = smul.u32 %s34, 256
        %s762 = smul.u32 %s36, 128
        %s763 = sadd.s32 %s761, %s762
        %s764 = sshra.s32 %s763, 4
        %s765 = sand.u32 %s763, 15
        %s766 = smul.addr %s764, 8
        %s767 = scalar_lea.vmem [#allocation3], %s766
        %v768 = vld [vmem:[%s767] sm:$0xff]
        %v769 = vld [vmem:[%s767 + $0x8] sm:$0xff]
        %v770 = vld [vmem:[%s767 + $0x10] sm:$0xff]
        %v771 = vld [vmem:[%s767 + $0x18] sm:$0xff]
        %v772 = vld [vmem:[%s767 + $0x20] sm:$0xff]
        %v773 = vld [vmem:[%s767 + $0x28] sm:$0xff]
        %v774 = vld [vmem:[%s767 + $0x30] sm:$0xff]
        %v775 = vld [vmem:[%s767 + $0x38] sm:$0xff]
        %v776 = vld [vmem:[#allocation2] sm:$0xff]
        %v777 = vld [vmem:[#allocation2 + $0x8] sm:$0xff]
        %v778 = vld [vmem:[#allocation2 + $0x10] sm:$0xff]
        %v779 = vld [vmem:[#allocation2 + $0x18] sm:$0xff]
        %v780 = vld [vmem:[#allocation2 + $0x20] sm:$0xff]
        %v781 = vld [vmem:[#allocation2 + $0x28] sm:$0xff]
        %v782 = vld [vmem:[#allocation2 + $0x30] sm:$0xff]
        %v783 = vld [vmem:[#allocation2 + $0x38] sm:$0xff]
        %v784 = vld [vmem:[#allocation2 + $0x40] sm:$0xff]
        %v785 = vld [vmem:[#allocation2 + $0x48] sm:$0xff]
        %v786 = vld [vmem:[#allocation2 + $0x50] sm:$0xff]
        %v787 = vld [vmem:[#allocation2 + $0x58] sm:$0xff]
        %v788 = vld [vmem:[#allocation2 + $0x60] sm:$0xff]
        %v789 = vld [vmem:[#allocation2 + $0x68] sm:$0xff]
        %v790 = vld [vmem:[#allocation2 + $0x70] sm:$0xff]
        %v791 = vld [vmem:[#allocation2 + $0x78] sm:$0xff]
        %v792 = vld [vmem:[%s310] sm:$0xf]
        %v793 = vld [vmem:[%s310 + $0x4] sm:$0xf]
        %v794 = vld [vmem:[%s310 + $0x8] sm:$0xf]
        %v795 = vld [vmem:[%s310 + $0xc] sm:$0xf]
        %v796 = vld [vmem:[%s310 + $0x10] sm:$0xf]
        %v797 = vld [vmem:[%s310 + $0x14] sm:$0xf]
        %v798 = vld [vmem:[%s310 + $0x18] sm:$0xf]
        %v799 = vld [vmem:[%s310 + $0x1c] sm:$0xf]
        %v800 = vld [vmem:[%s310 + $0x20] sm:$0xf]
        %v801 = vld [vmem:[%s310 + $0x24] sm:$0xf]
        %v802 = vld [vmem:[%s310 + $0x28] sm:$0xf]
        %v803 = vld [vmem:[%s310 + $0x2c] sm:$0xf]
        %v804 = vld [vmem:[%s310 + $0x30] sm:$0xf]
        %v805 = vld [vmem:[%s310 + $0x34] sm:$0xf]
        %v806 = vld [vmem:[%s310 + $0x38] sm:$0xf]
        %v807 = vld [vmem:[%s310 + $0x3c] sm:$0xf]
        %v824 = vunpack.c.l.b16 %v792
        %v825 = vunpack.c.l.b16 %v793
        %v826 = vunpack.c.l.b16 %v794
        %v827 = vunpack.c.l.b16 %v795
        %v828 = vunpack.c.l.b16 %v796
        %v829 = vunpack.c.l.b16 %v797
        %v830 = vunpack.c.l.b16 %v798
        %v831 = vunpack.c.l.b16 %v799
        %v832 = vunpack.c.l.b16 %v800
        %v833 = vunpack.c.l.b16 %v801
        %v834 = vunpack.c.l.b16 %v802
        %v835 = vunpack.c.l.b16 %v803
        %v836 = vunpack.c.l.b16 %v804
        %v837 = vunpack.c.l.b16 %v805
        %v838 = vunpack.c.l.b16 %v806
        %v839 = vunpack.c.l.b16 %v807
        %v840 = vpack.c.b16 %v825, %v824
        %v841 = vpack.c.b16 %v827, %v826
        %v842 = vpack.c.b16 %v829, %v828
        %v843 = vpack.c.b16 %v831, %v830
        %v844 = vpack.c.b16 %v833, %v832
        %v845 = vpack.c.b16 %v835, %v834
        %v846 = vpack.c.b16 %v837, %v836
        %v847 = vpack.c.b16 %v839, %v838
        %856 = vmatprep.subr.bf16.mxu0 0
        %857 = vmatpush1.bf16.msra.mxu0 %v768
        %858 = vmatprep.subr.bf16.mxu0 0
        %859 = vmatpush1.bf16.msra.mxu0 %v769
        %860 = vmatprep.subr.bf16.mxu0 0
        %861 = vmatpush1.bf16.msra.mxu0 %v770
        %862 = vmatprep.subr.bf16.mxu0 0
        %863 = vmatpush1.bf16.msra.mxu0 %v771
        %864 = vmatprep.subr.bf16.mxu0 0
        %865 = vmatpush1.bf16.msra.mxu0 %v772
        %866 = vmatprep.subr.bf16.mxu0 0
        %867 = vmatpush1.bf16.msra.mxu0 %v773
        %868 = vmatprep.subr.bf16.mxu0 0
        %869 = vmatpush1.bf16.msra.mxu0 %v774
        %870 = vmatprep.subr.bf16.mxu0 0
        %871 = vmatpush1.bf16.msra.mxu0 %v775
        %872 = vmatprep.subr.bf16.mxu0 0
        %873 = vmatpush1.bf16.msra.mxu0 0
        %874 = vmatprep.subr.bf16.mxu0 0
        %875 = vmatpush1.bf16.msra.mxu0 0
        %876 = vmatprep.subr.bf16.mxu0 0
        %877 = vmatpush1.bf16.msra.mxu0 0
        %878 = vmatprep.subr.bf16.mxu0 0
        %879 = vmatpush1.bf16.msra.mxu0 0
        %880 = vmatprep.subr.bf16.mxu0 0
        %881 = vmatpush1.bf16.msra.mxu0 0
        %882 = vmatprep.subr.bf16.mxu0 0
        %883 = vmatpush1.bf16.msra.mxu0 0
        %884 = vmatprep.subr.bf16.mxu0 0
        %885 = vmatpush1.bf16.msra.mxu0 0
        %886 = vmatprep.subr.bf16.mxu0 0
        %887 = vmatpush1.bf16.msra.mxu0 0
        %888 = vmatprep.mubr.bf16.mxu0 0
        %889 = vmatmul.mubr.bf16.gmra.mrb[0].mxu0 %v840
        %v890 = vpop.f32.mrb[0].mxu0
        %v891 = vadd.f32 0.0, %v890
        %v892 = vpop.f32.mrb[0].mxu0
        %v893 = vpop.f32.mrb[0].mxu0
        %v894 = vadd.f32 0.0, %v893
        %v895 = vpop.f32.mrb[0].mxu0
        %896 = vmatprep.mubr.bf16.mxu0 0
        %897 = vmatmul.mubr.bf16.gmra.mrb[0].mxu0 %v841
        %v898 = vpop.f32.mrb[0].mxu0
        %v899 = vadd.f32 0.0, %v898
        %v900 = vpop.f32.mrb[0].mxu0
        %v901 = vpop.f32.mrb[0].mxu0
        %v902 = vadd.f32 0.0, %v901
        %v903 = vpop.f32.mrb[0].mxu0
        %904 = vmatprep.mubr.bf16.mxu0 0
        %905 = vmatmul.mubr.bf16.gmra.mrb[0].mxu0 %v842
        %v906 = vpop.f32.mrb[0].mxu0
        %v907 = vadd.f32 0.0, %v906
        %v908 = vpop.f32.mrb[0].mxu0
        %v909 = vpop.f32.mrb[0].mxu0
        %v910 = vadd.f32 0.0, %v909
        %v911 = vpop.f32.mrb[0].mxu0
        %912 = vmatprep.mubr.bf16.mxu0 0
        %913 = vmatmul.mubr.bf16.gmra.mrb[0].mxu0 %v843
        %v914 = vpop.f32.mrb[0].mxu0
        %v915 = vadd.f32 0.0, %v914
        %v916 = vpop.f32.mrb[0].mxu0
        %v917 = vpop.f32.mrb[0].mxu0
        %v918 = vadd.f32 0.0, %v917
        %v919 = vpop.f32.mrb[0].mxu0
        %920 = vmatprep.mubr.bf16.mxu0 0
        %921 = vmatmul.mubr.bf16.gmra.mrb[0].mxu0 %v844
        %v922 = vpop.f32.mrb[0].mxu0
        %v923 = vadd.f32 0.0, %v922
        %v924 = vpop.f32.mrb[0].mxu0
        %v925 = vpop.f32.mrb[0].mxu0
        %v926 = vadd.f32 0.0, %v925
        %v927 = vpop.f32.mrb[0].mxu0
        %928 = vmatprep.mubr.bf16.mxu0 0
        %929 = vmatmul.mubr.bf16.gmra.mrb[0].mxu0 %v845
        %v930 = vpop.f32.mrb[0].mxu0
        %v931 = vadd.f32 0.0, %v930
        %v932 = vpop.f32.mrb[0].mxu0
        %v933 = vpop.f32.mrb[0].mxu0
        %v934 = vadd.f32 0.0, %v933
        %v935 = vpop.f32.mrb[0].mxu0
        %936 = vmatprep.mubr.bf16.mxu0 0
        %937 = vmatmul.mubr.bf16.gmra.mrb[0].mxu0 %v846
        %v938 = vpop.f32.mrb[0].mxu0
        %v939 = vadd.f32 0.0, %v938
        %v940 = vpop.f32.mrb[0].mxu0
        %v941 = vpop.f32.mrb[0].mxu0
        %v942 = vadd.f32 0.0, %v941
        %v943 = vpop.f32.mrb[0].mxu0
        %944 = vmatprep.mubr.bf16.mxu0 0
        %945 = vmatmul.mubr.bf16.gmra.mrb[0].mxu0 %v847
        %v946 = vpop.f32.mrb[0].mxu0
        %v947 = vadd.f32 0.0, %v946
        %v948 = vpop.f32.mrb[0].mxu0
        %v949 = vpop.f32.mrb[0].mxu0
        %v950 = vadd.f32 0.0, %v949
        %v951 = vpop.f32.mrb[0].mxu0
        %952 = vdwg.mxu0
        %v953 = vadd.f32 %v776, %v891
        %v954 = vadd.f32 %v777, %v894
        %v955 = vadd.f32 %v778, %v899
        %v956 = vadd.f32 %v779, %v902
        %v957 = vadd.f32 %v780, %v907
        %v958 = vadd.f32 %v781, %v910
        %v959 = vadd.f32 %v782, %v915
        %v960 = vadd.f32 %v783, %v918
        %v961 = vadd.f32 %v784, %v923
        %v962 = vadd.f32 %v785, %v926
        %v963 = vadd.f32 %v786, %v931
        %v964 = vadd.f32 %v787, %v934
        %v965 = vadd.f32 %v788, %v939
        %v966 = vadd.f32 %v789, %v942
        %v967 = vadd.f32 %v790, %v947
        %v968 = vadd.f32 %v791, %v950
        %969 = vst [vmem:[#allocation2] sm:$0xff] %v953
        %970 = vst [vmem:[#allocation2 + $0x8] sm:$0xff] %v954
        %971 = vst [vmem:[#allocation2 + $0x10] sm:$0xff] %v955
        %972 = vst [vmem:[#allocation2 + $0x18] sm:$0xff] %v956
        %973 = vst [vmem:[#allocation2 + $0x20] sm:$0xff] %v957
        %974 = vst [vmem:[#allocation2 + $0x28] sm:$0xff] %v958
        %975 = vst [vmem:[#allocation2 + $0x30] sm:$0xff] %v959
        %976 = vst [vmem:[#allocation2 + $0x38] sm:$0xff] %v960
        %977 = vst [vmem:[#allocation2 + $0x40] sm:$0xff] %v961
        %978 = vst [vmem:[#allocation2 + $0x48] sm:$0xff] %v962
        %979 = vst [vmem:[#allocation2 + $0x50] sm:$0xff] %v963
        %980 = vst [vmem:[#allocation2 + $0x58] sm:$0xff] %v964
        %981 = vst [vmem:[#allocation2 + $0x60] sm:$0xff] %v965
        %982 = vst [vmem:[#allocation2 + $0x68] sm:$0xff] %v966
        %983 = vst [vmem:[#allocation2 + $0x70] sm:$0xff] %v967
        %984 = vst [vmem:[#allocation2 + $0x78] sm:$0xff] %v968
        %p985 = scmp.eq.s32.totalorder %s36, 1
        %p986 = pnand %p985, %p364
        %p987 = pneg %p986
        // Predicated region
        $region69: #{tpu_custom_call.1} parent=39 // pred_check
          _
        $region70: #{tpu_custom_call.1} parent=39 // pred_check_branch
          %989 = sbr.rel (%p986) target = $region72
        $region71: #{tpu_custom_call.1} parent=39 // pred_region
          %v990 = vld [vmem:[#allocation2] sm:$0xff]
          %v991 = vld [vmem:[#allocation2 + $0x8] sm:$0xff]
          %v992 = vld [vmem:[#allocation2 + $0x10] sm:$0xff]
          %v993 = vld [vmem:[#allocation2 + $0x18] sm:$0xff]
          %v994 = vld [vmem:[#allocation2 + $0x20] sm:$0xff]
          %v995 = vld [vmem:[#allocation2 + $0x28] sm:$0xff]
          %v996 = vld [vmem:[#allocation2 + $0x30] sm:$0xff]
          %v997 = vld [vmem:[#allocation2 + $0x38] sm:$0xff]
          %v998 = vld [vmem:[#allocation2 + $0x40] sm:$0xff]
          %v999 = vld [vmem:[#allocation2 + $0x48] sm:$0xff]
          %v1000 = vld [vmem:[#allocation2 + $0x50] sm:$0xff]
          %v1001 = vld [vmem:[#allocation2 + $0x58] sm:$0xff]
          %v1002 = vld [vmem:[#allocation2 + $0x60] sm:$0xff]
          %v1003 = vld [vmem:[#allocation2 + $0x68] sm:$0xff]
          %v1004 = vld [vmem:[#allocation2 + $0x70] sm:$0xff]
          %v1005 = vld [vmem:[#allocation2 + $0x78] sm:$0xff]
          %v1006 = vld [vmem:[#allocation13] sm:$0x1]
          %v1007 = vlaneseq
          %v1008 = vshrl.u32 %v1007, 7
          %v1009 = vsub.s32 0, %v1008
          %v1010 = vrot.slane %v1006, %v1009
          %v1011 = vadd.f32 %v990, %v1010
          %v1012 = vadd.f32 %v991, %v1010
          %v1013 = vadd.f32 %v992, %v1010
          %v1014 = vadd.f32 %v993, %v1010
          %v1015 = vadd.f32 %v994, %v1010
          %v1016 = vadd.f32 %v995, %v1010
          %v1017 = vadd.f32 %v996, %v1010
          %v1018 = vadd.f32 %v997, %v1010
          %v1019 = vadd.f32 %v998, %v1010
          %v1020 = vadd.f32 %v999, %v1010
          %v1021 = vadd.f32 %v1000, %v1010
          %v1022 = vadd.f32 %v1001, %v1010
          %v1023 = vadd.f32 %v1002, %v1010
          %v1024 = vadd.f32 %v1003, %v1010
          %v1025 = vadd.f32 %v1004, %v1010
          %v1026 = vadd.f32 %v1005, %v1010
          %1027 = vst [vmem:[%s352] sm:$0xff] %v1011
          %1028 = vst [vmem:[%s352 + $0x8] sm:$0xff] %v1012
          %1029 = vst [vmem:[%s352 + $0x10] sm:$0xff] %v1013
          %1030 = vst [vmem:[%s352 + $0x18] sm:$0xff] %v1014
          %1031 = vst [vmem:[%s352 + $0x20] sm:$0xff] %v1015
          %1032 = vst [vmem:[%s352 + $0x28] sm:$0xff] %v1016
          %1033 = vst [vmem:[%s352 + $0x30] sm:$0xff] %v1017
          %1034 = vst [vmem:[%s352 + $0x38] sm:$0xff] %v1018
          %1035 = vst [vmem:[%s352 + $0x40] sm:$0xff] %v1019
          %1036 = vst [vmem:[%s352 + $0x48] sm:$0xff] %v1020
          %1037 = vst [vmem:[%s352 + $0x50] sm:$0xff] %v1021
          %1038 = vst [vmem:[%s352 + $0x58] sm:$0xff] %v1022
          %1039 = vst [vmem:[%s352 + $0x60] sm:$0xff] %v1023
          %1040 = vst [vmem:[%s352 + $0x68] sm:$0xff] %v1024
          %1041 = vst [vmem:[%s352 + $0x70] sm:$0xff] %v1025
          %1042 = vst [vmem:[%s352 + $0x78] sm:$0xff] %v1026
          %s1043 = smul.u32 %s35, 128
          %s1044 = scalar_lea.vmem [#allocation4], %s1043
          %1045 = vst [vmem:[%s1044] sm:$0xff] %v1011
          %1046 = vst [vmem:[%s1044 + $0x8] sm:$0xff] %v1012
          %1047 = vst [vmem:[%s1044 + $0x10] sm:$0xff] %v1013
          %1048 = vst [vmem:[%s1044 + $0x18] sm:$0xff] %v1014
          %1049 = vst [vmem:[%s1044 + $0x20] sm:$0xff] %v1015
          %1050 = vst [vmem:[%s1044 + $0x28] sm:$0xff] %v1016
          %1051 = vst [vmem:[%s1044 + $0x30] sm:$0xff] %v1017
          %1052 = vst [vmem:[%s1044 + $0x38] sm:$0xff] %v1018
          %1053 = vst [vmem:[%s1044 + $0x40] sm:$0xff] %v1019
          %1054 = vst [vmem:[%s1044 + $0x48] sm:$0xff] %v1020
          %1055 = vst [vmem:[%s1044 + $0x50] sm:$0xff] %v1021
          %1056 = vst [vmem:[%s1044 + $0x58] sm:$0xff] %v1022
          %1057 = vst [vmem:[%s1044 + $0x60] sm:$0xff] %v1023
          %1058 = vst [vmem:[%s1044 + $0x68] sm:$0xff] %v1024
          %1059 = vst [vmem:[%s1044 + $0x70] sm:$0xff] %v1025
          %1060 = vst [vmem:[%s1044 + $0x78] sm:$0xff] %v1026
          %v1061 = vmax.f32 %v1011, 0.0
          %v1062 = vmax.f32 %v1012, 0.0
          %v1063 = vmax.f32 %v1013, 0.0
          %v1064 = vmax.f32 %v1014, 0.0
          %v1065 = vmax.f32 %v1015, 0.0
          %v1066 = vmax.f32 %v1016, 0.0
          %v1067 = vmax.f32 %v1017, 0.0
          %v1068 = vmax.f32 %v1018, 0.0
          %v1069 = vmax.f32 %v1019, 0.0
          %v1070 = vmax.f32 %v1020, 0.0
          %v1071 = vmax.f32 %v1021, 0.0
          %v1072 = vmax.f32 %v1022, 0.0
          %v1073 = vmax.f32 %v1023, 0.0
          %v1074 = vmax.f32 %v1024, 0.0
          %v1075 = vmax.f32 %v1025, 0.0
          %v1076 = vmax.f32 %v1026, 0.0
          %v1077 = vld [vmem:[#allocation11] sm:$0xff]
          %v1078 = vld [vmem:[#allocation11 + $0x8] sm:$0xff]
          %v1079 = vld [vmem:[#allocation11 + $0x10] sm:$0xff]
          %v1080 = vld [vmem:[#allocation11 + $0x18] sm:$0xff]
          %v1081 = vld [vmem:[#allocation11 + $0x20] sm:$0xff]
          %v1082 = vld [vmem:[#allocation11 + $0x28] sm:$0xff]
          %v1083 = vld [vmem:[#allocation11 + $0x30] sm:$0xff]
          %v1084 = vld [vmem:[#allocation11 + $0x38] sm:$0xff]
          %v1085 = vld [vmem:[#allocation11 + $0x40] sm:$0xff]
          %v1086 = vld [vmem:[#allocation11 + $0x48] sm:$0xff]
          %v1087 = vld [vmem:[#allocation11 + $0x50] sm:$0xff]
          %v1088 = vld [vmem:[#allocation11 + $0x58] sm:$0xff]
          %v1089 = vld [vmem:[#allocation11 + $0x60] sm:$0xff]
          %v1090 = vld [vmem:[#allocation11 + $0x68] sm:$0xff]
          %v1091 = vld [vmem:[#allocation11 + $0x70] sm:$0xff]
          %v1092 = vld [vmem:[#allocation11 + $0x78] sm:$0xff]
          %1093 = vmatprep.subr.mxu0 0.0
          %1094 = vmatpush1.msra.mxu0 %v1077
          %1095 = vmatprep.subr.mxu0 0.0
          %1096 = vmatpush1.msra.mxu0 %v1078
          %1097 = vmatprep.subr.mxu0 0.0
          %1098 = vmatpush1.msra.mxu0 %v1079
          %1099 = vmatprep.subr.mxu0 0.0
          %1100 = vmatpush1.msra.mxu0 %v1080
          %1101 = vmatprep.subr.mxu0 0.0
          %1102 = vmatpush1.msra.mxu0 %v1081
          %1103 = vmatprep.subr.mxu0 0.0
          %1104 = vmatpush1.msra.mxu0 %v1082
          %1105 = vmatprep.subr.mxu0 0.0
          %1106 = vmatpush1.msra.mxu0 %v1083
          %1107 = vmatprep.subr.mxu0 0.0
          %1108 = vmatpush1.msra.mxu0 %v1084
          %1109 = vmatprep.subr.mxu0 0.0
          %1110 = vmatpush1.msra.mxu0 %v1085
          %1111 = vmatprep.subr.mxu0 0.0
          %1112 = vmatpush1.msra.mxu0 %v1086
          %1113 = vmatprep.subr.mxu0 0.0
          %1114 = vmatpush1.msra.mxu0 %v1087
          %1115 = vmatprep.subr.mxu0 0.0
          %1116 = vmatpush1.msra.mxu0 %v1088
          %1117 = vmatprep.subr.mxu0 0.0
          %1118 = vmatpush1.msra.mxu0 %v1089
          %1119 = vmatprep.subr.mxu0 0.0
          %1120 = vmatpush1.msra.mxu0 %v1090
          %1121 = vmatprep.subr.mxu0 0.0
          %1122 = vmatpush1.msra.mxu0 %v1091
          %1123 = vmatprep.subr.mxu0 0.0
          %1124 = vmatpush1.msra.mxu0 %v1092
          %1125 = vmatprep.subr.mxu0 0.0
          %1126 = vmatpush1.msra.mxu0 0.0
          %1127 = vmatprep.subr.mxu0 0.0
          %1128 = vmatpush1.msra.mxu0 0.0
          %1129 = vmatprep.subr.mxu0 0.0
          %1130 = vmatpush1.msra.mxu0 0.0
          %1131 = vmatprep.subr.mxu0 0.0
          %1132 = vmatpush1.msra.mxu0 0.0
          %1133 = vmatprep.subr.mxu0 0.0
          %1134 = vmatpush1.msra.mxu0 0.0
          %1135 = vmatprep.subr.mxu0 0.0
          %1136 = vmatpush1.msra.mxu0 0.0
          %1137 = vmatprep.subr.mxu0 0.0
          %1138 = vmatpush1.msra.mxu0 0.0
          %1139 = vmatprep.subr.mxu0 0.0
          %1140 = vmatpush1.msra.mxu0 0.0
          %1141 = vmatprep.subr.mxu0 0.0
          %1142 = vmatpush1.msra.mxu0 0.0
          %1143 = vmatprep.subr.mxu0 0.0
          %1144 = vmatpush1.msra.mxu0 0.0
          %1145 = vmatprep.subr.mxu0 0.0
          %1146 = vmatpush1.msra.mxu0 0.0
          %1147 = vmatprep.subr.mxu0 0.0
          %1148 = vmatpush1.msra.mxu0 0.0
          %1149 = vmatprep.subr.mxu0 0.0
          %1150 = vmatpush1.msra.mxu0 0.0
          %1151 = vmatprep.subr.mxu0 0.0
          %1152 = vmatpush1.msra.mxu0 0.0
          %1153 = vmatprep.subr.mxu0 0.0
          %1154 = vmatpush1.msra.mxu0 0.0
          %1155 = vmatprep.subr.mxu0 0.0
          %1156 = vmatpush1.msra.mxu0 0.0
          %1157 = vmatprep.mubr.f32.mxu0 0.0
          %1158 = vmatmul.mubr.f32.gmra.mrb[0].mxu0 %v1061
          %v1159 = vpop.f32.mrb[0].mxu0
          %v1160 = vadd.f32 0.0, %v1159
          %v1161 = vpop.f32.mrb[0].mxu0
          %1162 = vmatprep.mubr.f32.mxu0 0.0
          %1163 = vmatmul.mubr.f32.gmra.mrb[0].mxu0 %v1062
          %v1164 = vpop.f32.mrb[0].mxu0
          %v1165 = vadd.f32 0.0, %v1164
          %v1166 = vpop.f32.mrb[0].mxu0
          %1167 = vmatprep.mubr.f32.mxu0 0.0
          %1168 = vmatmul.mubr.f32.gmra.mrb[0].mxu0 %v1063
          %v1169 = vpop.f32.mrb[0].mxu0
          %v1170 = vadd.f32 0.0, %v1169
          %v1171 = vpop.f32.mrb[0].mxu0
          %1172 = vmatprep.mubr.f32.mxu0 0.0
          %1173 = vmatmul.mubr.f32.gmra.mrb[0].mxu0 %v1064
          %v1174 = vpop.f32.mrb[0].mxu0
          %v1175 = vadd.f32 0.0, %v1174
          %v1176 = vpop.f32.mrb[0].mxu0
          %1177 = vmatprep.mubr.f32.mxu0 0.0
          %1178 = vmatmul.mubr.f32.gmra.mrb[0].mxu0 %v1065
          %v1179 = vpop.f32.mrb[0].mxu0
          %v1180 = vadd.f32 0.0, %v1179
          %v1181 = vpop.f32.mrb[0].mxu0
          %1182 = vmatprep.mubr.f32.mxu0 0.0
          %1183 = vmatmul.mubr.f32.gmra.mrb[0].mxu0 %v1066
          %v1184 = vpop.f32.mrb[0].mxu0
          %v1185 = vadd.f32 0.0, %v1184
          %v1186 = vpop.f32.mrb[0].mxu0
          %1187 = vmatprep.mubr.f32.mxu0 0.0
          %1188 = vmatmul.mubr.f32.gmra.mrb[0].mxu0 %v1067
          %v1189 = vpop.f32.mrb[0].mxu0
          %v1190 = vadd.f32 0.0, %v1189
          %v1191 = vpop.f32.mrb[0].mxu0
          %1192 = vmatprep.mubr.f32.mxu0 0.0
          %1193 = vmatmul.mubr.f32.gmra.mrb[0].mxu0 %v1068
          %v1194 = vpop.f32.mrb[0].mxu0
          %v1195 = vadd.f32 0.0, %v1194
          %v1196 = vpop.f32.mrb[0].mxu0
          %1197 = vmatprep.mubr.f32.mxu0 0.0
          %1198 = vmatmul.mubr.f32.gmra.mrb[0].mxu0 %v1069
          %v1199 = vpop.f32.mrb[0].mxu0
          %v1200 = vadd.f32 0.0, %v1199
          %v1201 = vpop.f32.mrb[0].mxu0
          %1202 = vmatprep.mubr.f32.mxu0 0.0
          %1203 = vmatmul.mubr.f32.gmra.mrb[0].mxu0 %v1070
          %v1204 = vpop.f32.mrb[0].mxu0
          %v1205 = vadd.f32 0.0, %v1204
          %v1206 = vpop.f32.mrb[0].mxu0
          %1207 = vmatprep.mubr.f32.mxu0 0.0
          %1208 = vmatmul.mubr.f32.gmra.mrb[0].mxu0 %v1071
          %v1209 = vpop.f32.mrb[0].mxu0
          %v1210 = vadd.f32 0.0, %v1209
          %v1211 = vpop.f32.mrb[0].mxu0
          %1212 = vmatprep.mubr.f32.mxu0 0.0
          %1213 = vmatmul.mubr.f32.gmra.mrb[0].mxu0 %v1072
          %v1214 = vpop.f32.mrb[0].mxu0
          %v1215 = vadd.f32 0.0, %v1214
          %v1216 = vpop.f32.mrb[0].mxu0
          %1217 = vmatprep.mubr.f32.mxu0 0.0
          %1218 = vmatmul.mubr.f32.gmra.mrb[0].mxu0 %v1073
          %v1219 = vpop.f32.mrb[0].mxu0
          %v1220 = vadd.f32 0.0, %v1219
          %v1221 = vpop.f32.mrb[0].mxu0
          %1222 = vmatprep.mubr.f32.mxu0 0.0
          %1223 = vmatmul.mubr.f32.gmra.mrb[0].mxu0 %v1074
          %v1224 = vpop.f32.mrb[0].mxu0
          %v1225 = vadd.f32 0.0, %v1224
          %v1226 = vpop.f32.mrb[0].mxu0
          %1227 = vmatprep.mubr.f32.mxu0 0.0
          %1228 = vmatmul.mubr.f32.gmra.mrb[0].mxu0 %v1075
          %v1229 = vpop.f32.mrb[0].mxu0
          %v1230 = vadd.f32 0.0, %v1229
          %v1231 = vpop.f32.mrb[0].mxu0
          %1232 = vmatprep.mubr.f32.mxu0 0.0
          %1233 = vmatmul.mubr.f32.gmra.mrb[0].mxu0 %v1076
          %v1234 = vpop.f32.mrb[0].mxu0
          %v1235 = vadd.f32 0.0, %v1234
          %v1236 = vpop.f32.mrb[0].mxu0
          %1237 = vdwg.mxu0
          %v1238 = vpack.c.bf16 %v1165, %v1160
          %v1239 = vpack.c.bf16 %v1175, %v1170
          %v1240 = vpack.c.bf16 %v1185, %v1180
          %v1241 = vpack.c.bf16 %v1195, %v1190
          %v1242 = vpack.c.bf16 %v1205, %v1200
          %v1243 = vpack.c.bf16 %v1215, %v1210
          %v1244 = vpack.c.bf16 %v1225, %v1220
          %v1245 = vpack.c.bf16 %v1235, %v1230
          %s1246 = sadd.s32 %s1043, 256
          %s1247 = sshra.s32 %s1246, 4
          %s1248 = sand.u32 %s1246, 15
          %s1249 = smul.addr %s1247, 8
          %s1250 = scalar_lea.vmem [#allocation3], %s1249
          %1251 = vst [vmem:[%s1250] sm:$0xff] %v1238
          %1252 = vst [vmem:[%s1250 + $0x8] sm:$0xff] %v1239
          %1253 = vst [vmem:[%s1250 + $0x10] sm:$0xff] %v1240
          %1254 = vst [vmem:[%s1250 + $0x18] sm:$0xff] %v1241
          %1255 = vst [vmem:[%s1250 + $0x20] sm:$0xff] %v1242
          %1256 = vst [vmem:[%s1250 + $0x28] sm:$0xff] %v1243
          %1257 = vst [vmem:[%s1250 + $0x30] sm:$0xff] %v1244
          %1258 = vst [vmem:[%s1250 + $0x38] sm:$0xff] %v1245
          %1259 = vst [vmem:[%s359] sm:$0xff] 0.0
          %1260 = vst [vmem:[%s359 + $0x8] sm:$0xff] 0.0
          %1261 = vst [vmem:[%s359 + $0x10] sm:$0xff] 0.0
          %1262 = vst [vmem:[%s359 + $0x18] sm:$0xff] 0.0
          %1263 = vst [vmem:[%s359 + $0x20] sm:$0xff] 0.0
          %1264 = vst [vmem:[%s359 + $0x28] sm:$0xff] 0.0
          %1265 = vst [vmem:[%s359 + $0x30] sm:$0xff] 0.0
          %1266 = vst [vmem:[%s359 + $0x38] sm:$0xff] 0.0
          %1267 = vst [vmem:[%s359 + $0x40] sm:$0xff] 0.0
          %1268 = vst [vmem:[%s359 + $0x48] sm:$0xff] 0.0
          %1269 = vst [vmem:[%s359 + $0x50] sm:$0xff] 0.0
          %1270 = vst [vmem:[%s359 + $0x58] sm:$0xff] 0.0
          %1271 = vst [vmem:[%s359 + $0x60] sm:$0xff] 0.0
          %1272 = vst [vmem:[%s359 + $0x68] sm:$0xff] 0.0
          %1273 = vst [vmem:[%s359 + $0x70] sm:$0xff] 0.0
          %1274 = vst [vmem:[%s359 + $0x78] sm:$0xff] 0.0
        $region72: #{tpu_custom_call.1} parent=39 // pred_fallthru
          _
        %p1275 = scmp.eq.s32.totalorder %s34, 1
        %p1276 = pnand %p985, %p1275
        %p1277 = pneg %p1276
        // Predicated region
        $region73: #{tpu_custom_call.1} parent=39 // pred_check
          _
        $region74: #{tpu_custom_call.1} parent=39 // pred_check_branch
          %1279 = sbr.rel (%p1276) target = $region76
        $region75: #{tpu_custom_call.1} parent=39 // pred_region
          %v1280 = vld [vmem:[#allocation2] sm:$0xff]
          %v1281 = vld [vmem:[#allocation2 + $0x8] sm:$0xff]
          %v1282 = vld [vmem:[#allocation2 + $0x10] sm:$0xff]
          %v1283 = vld [vmem:[#allocation2 + $0x18] sm:$0xff]
          %v1284 = vld [vmem:[#allocation2 + $0x20] sm:$0xff]
          %v1285 = vld [vmem:[#allocation2 + $0x28] sm:$0xff]
          %v1286 = vld [vmem:[#allocation2 + $0x30] sm:$0xff]
          %v1287 = vld [vmem:[#allocation2 + $0x38] sm:$0xff]
          %v1288 = vld [vmem:[#allocation2 + $0x40] sm:$0xff]
          %v1289 = vld [vmem:[#allocation2 + $0x48] sm:$0xff]
          %v1290 = vld [vmem:[#allocation2 + $0x50] sm:$0xff]
          %v1291 = vld [vmem:[#allocation2 + $0x58] sm:$0xff]
          %v1292 = vld [vmem:[#allocation2 + $0x60] sm:$0xff]
          %v1293 = vld [vmem:[#allocation2 + $0x68] sm:$0xff]
          %v1294 = vld [vmem:[#allocation2 + $0x70] sm:$0xff]
          %v1295 = vld [vmem:[#allocation2 + $0x78] sm:$0xff]
          %v1296 = vld [vmem:[#allocation13 + $0x1] sm:$0x1]
          %v1297 = vlaneseq
          %v1298 = vshrl.u32 %v1297, 7
          %v1299 = vsub.s32 0, %v1298
          %v1300 = vrot.slane %v1296, %v1299
          %v1301 = vadd.f32 %v1280, %v1300
          %v1302 = vadd.f32 %v1281, %v1300
          %v1303 = vadd.f32 %v1282, %v1300
          %v1304 = vadd.f32 %v1283, %v1300
          %v1305 = vadd.f32 %v1284, %v1300
          %v1306 = vadd.f32 %v1285, %v1300
          %v1307 = vadd.f32 %v1286, %v1300
          %v1308 = vadd.f32 %v1287, %v1300
          %v1309 = vadd.f32 %v1288, %v1300
          %v1310 = vadd.f32 %v1289, %v1300
          %v1311 = vadd.f32 %v1290, %v1300
          %v1312 = vadd.f32 %v1291, %v1300
          %v1313 = vadd.f32 %v1292, %v1300
          %v1314 = vadd.f32 %v1293, %v1300
          %v1315 = vadd.f32 %v1294, %v1300
          %v1316 = vadd.f32 %v1295, %v1300
          %1317 = vst [vmem:[%s359] sm:$0xff] %v1301
          %1318 = vst [vmem:[%s359 + $0x8] sm:$0xff] %v1302
          %1319 = vst [vmem:[%s359 + $0x10] sm:$0xff] %v1303
          %1320 = vst [vmem:[%s359 + $0x18] sm:$0xff] %v1304
          %1321 = vst [vmem:[%s359 + $0x20] sm:$0xff] %v1305
          %1322 = vst [vmem:[%s359 + $0x28] sm:$0xff] %v1306
          %1323 = vst [vmem:[%s359 + $0x30] sm:$0xff] %v1307
          %1324 = vst [vmem:[%s359 + $0x38] sm:$0xff] %v1308
          %1325 = vst [vmem:[%s359 + $0x40] sm:$0xff] %v1309
          %1326 = vst [vmem:[%s359 + $0x48] sm:$0xff] %v1310
          %1327 = vst [vmem:[%s359 + $0x50] sm:$0xff] %v1311
          %1328 = vst [vmem:[%s359 + $0x58] sm:$0xff] %v1312
          %1329 = vst [vmem:[%s359 + $0x60] sm:$0xff] %v1313
          %1330 = vst [vmem:[%s359 + $0x68] sm:$0xff] %v1314
          %1331 = vst [vmem:[%s359 + $0x70] sm:$0xff] %v1315
          %1332 = vst [vmem:[%s359 + $0x78] sm:$0xff] %v1316
          %s1333 = smul.u32 %s35, 128
          %s1334 = scalar_lea.vmem [#allocation4], %s1333
          %v1335 = vld [vmem:[%s1334] sm:$0xff]
          %v1336 = vld [vmem:[%s1334 + $0x8] sm:$0xff]
          %v1337 = vld [vmem:[%s1334 + $0x10] sm:$0xff]
          %v1338 = vld [vmem:[%s1334 + $0x18] sm:$0xff]
          %v1339 = vld [vmem:[%s1334 + $0x20] sm:$0xff]
          %v1340 = vld [vmem:[%s1334 + $0x28] sm:$0xff]
          %v1341 = vld [vmem:[%s1334 + $0x30] sm:$0xff]
          %v1342 = vld [vmem:[%s1334 + $0x38] sm:$0xff]
          %v1343 = vld [vmem:[%s1334 + $0x40] sm:$0xff]
          %v1344 = vld [vmem:[%s1334 + $0x48] sm:$0xff]
          %v1345 = vld [vmem:[%s1334 + $0x50] sm:$0xff]
          %v1346 = vld [vmem:[%s1334 + $0x58] sm:$0xff]
          %v1347 = vld [vmem:[%s1334 + $0x60] sm:$0xff]
          %v1348 = vld [vmem:[%s1334 + $0x68] sm:$0xff]
          %v1349 = vld [vmem:[%s1334 + $0x70] sm:$0xff]
          %v1350 = vld [vmem:[%s1334 + $0x78] sm:$0xff]
          %1351 = vst [vmem:[%s352] sm:$0xff] %v1335
          %1352 = vst [vmem:[%s352 + $0x8] sm:$0xff] %v1336
          %1353 = vst [vmem:[%s352 + $0x10] sm:$0xff] %v1337
          %1354 = vst [vmem:[%s352 + $0x18] sm:$0xff] %v1338
          %1355 = vst [vmem:[%s352 + $0x20] sm:$0xff] %v1339
          %1356 = vst [vmem:[%s352 + $0x28] sm:$0xff] %v1340
          %1357 = vst [vmem:[%s352 + $0x30] sm:$0xff] %v1341
          %1358 = vst [vmem:[%s352 + $0x38] sm:$0xff] %v1342
          %1359 = vst [vmem:[%s352 + $0x40] sm:$0xff] %v1343
          %1360 = vst [vmem:[%s352 + $0x48] sm:$0xff] %v1344
          %1361 = vst [vmem:[%s352 + $0x50] sm:$0xff] %v1345
          %1362 = vst [vmem:[%s352 + $0x58] sm:$0xff] %v1346
          %1363 = vst [vmem:[%s352 + $0x60] sm:$0xff] %v1347
          %1364 = vst [vmem:[%s352 + $0x68] sm:$0xff] %v1348
          %1365 = vst [vmem:[%s352 + $0x70] sm:$0xff] %v1349
          %1366 = vst [vmem:[%s352 + $0x78] sm:$0xff] %v1350
        $region76: #{tpu_custom_call.1} parent=39 // pred_fallthru
          _
        %s1367 = sand.u32 %s168, 1
        %s1368 = scalar_lea.sflag [#allocation7], %s1367
        %s1369 = sand.u32 %s168, 1
        %s1370 = smul.addr %s1369, 128
        %s1371 = scalar_lea.vmem [#allocation14], %s1370
        %s1372 = sand.u32 %s194, 1
        %s1373 = scalar_lea.sflag [#allocation16], %s1372
        %s1374 = sand.u32 %s194, 1
        %s1375 = smul.addr %s1374, 128
        %s1376 = scalar_lea.vmem [#allocation15], %s1375
        // Predicated region
        $region77: #{tpu_custom_call.1} parent=39 // pred_check
          %p1377 = pneg %p178
        $region78: #{tpu_custom_call.1} parent=39 // pred_check_branch
          %1379 = sbr.rel (%p1377) target = $region80
        $region79: #{tpu_custom_call.1} parent=39 // pred_region
          %s1380 = smul.u32 16, %s35
          %s1382 = ssub.s32 2048, 2048
          %1383 = vsyncadd %s1368, %s1382
          %s1384 = smul.addr %s1380, 128
          %s1385 = scalar_lea.hbm %s5, %s1384
          %s1386 = sshll.u32 %s1371, 4
          %s1387 = int_to_ptr.vmem [resolvable:$true] %s1386
          %1392 = dma.vmem_to_hbm [thread:$0]  %s1387, 2048, %s1385, %s1368, 128, 128, 8
        $region80: #{tpu_custom_call.1} parent=39 // pred_fallthru
          _
        // Predicated region
        $region81: #{tpu_custom_call.1} parent=39 // pred_check
          %p1393 = pneg %p204
        $region82: #{tpu_custom_call.1} parent=39 // pred_check_branch
          %1395 = sbr.rel (%p1393) target = $region84
        $region83: #{tpu_custom_call.1} parent=39 // pred_region
          %s1396 = smul.u32 16, %s35
          %s1398 = ssub.s32 2048, 2048
          %1399 = vsyncadd %s1373, %s1398
          %s1400 = smul.addr %s1396, 128
          %s1401 = scalar_lea.hbm %s6, %s1400
          %s1402 = sshll.u32 %s1376, 4
          %s1403 = int_to_ptr.vmem [resolvable:$true] %s1402
          %1408 = dma.vmem_to_hbm [thread:$0]  %s1403, 2048, %s1401, %s1373, 128, 128, 8
        $region84: #{tpu_custom_call.1} parent=39 // pred_fallthru
          _
      $region40: #{tpu_custom_call.1} parent=5 // pred_fallthru
        _
      %p1409 = scmp.le.s32.totalorder 2, %s24
      // Predicated region
      $region85: #{tpu_custom_call.1} parent=5 // pred_check
        %p1410 = pneg %p1409
      $region86: #{tpu_custom_call.1} parent=5 // pred_check_branch
        %1412 = sbr.rel (%p1410) target = $region88
      $region87: #{tpu_custom_call.1} parent=5 // pred_region
        %s1413 = ssub.s32 %s24, 2
        // Predicated region
        $region89: #{tpu_custom_call.1} parent=87 // pred_check
          %p1414 = pneg %p184
        $region90: #{tpu_custom_call.1} parent=87 // pred_check_branch
          %1416 = sbr.rel (%p1414) target = $region92
        $region91: #{tpu_custom_call.1} parent=87 // pred_region
          %s1417 = sand.u32 %s169, 1
          %s1418 = scalar_lea.sflag [#allocation7], %s1417
          %s1419 = sand.u32 %s169, 1
          %s1420 = smul.addr %s1419, 128
          %s1421 = scalar_lea.vmem [#allocation14], %s1420
          %1422 = dma.done %s1418, 2048
        $region92: #{tpu_custom_call.1} parent=87 // pred_fallthru
          _
        // Predicated region
        $region93: #{tpu_custom_call.1} parent=87 // pred_check
          %p1423 = pneg %p210
        $region94: #{tpu_custom_call.1} parent=87 // pred_check_branch
          %1425 = sbr.rel (%p1423) target = $region96
        $region95: #{tpu_custom_call.1} parent=87 // pred_region
          %s1426 = sand.u32 %s195, 1
          %s1427 = scalar_lea.sflag [#allocation16], %s1426
          %s1428 = sand.u32 %s195, 1
          %s1429 = smul.addr %s1428, 128
          %s1430 = scalar_lea.vmem [#allocation15], %s1429
          %1431 = dma.done %s1427, 2048
        $region96: #{tpu_custom_call.1} parent=87 // pred_fallthru
          _
      $region88: #{tpu_custom_call.1} parent=5 // pred_fallthru
        _
    $region6: #{tpu_custom_call.1} parent=1 // loop_footer
      %s28 = sadd.s32 1, %s24
    $region7: #{tpu_custom_call.1} parent=1 // loop_footer_branch
      %23 = sbr.rel target = $region3
    $region8: #{tpu_custom_call.1} parent=1 // loop_exit
      _
    %1432 = vsyncpa [#allocation6], 1
    %s1433 = scalar_lea.sflag [#allocation6], 1
    %1434 = vsyncpa %s1433, 1
    %1435 = vsyncpa [#allocation9], 1
    %1436 = vsyncpa [#allocation12], 1
    %1437 = vsyncpa [#allocation7], 1
    %s1438 = scalar_lea.sflag [#allocation7], 1
    %1439 = vsyncpa %s1438, 1
    %1440 = vsyncpa [#allocation16], 1
    %s1441 = scalar_lea.sflag [#allocation16], 1
    %1442 = vsyncpa %s1441, 1

</llo_original>
